<compile_context>
chip_gen: v7x
topology: tpu7x:2x2x1
jax: 0.10.0
libtpu: 0.0.40
codegen_flags: <defaults>
</compile_context>

<pallas_src>
import math
import jax
import jax.numpy as jnp
from jax.experimental import pallas as pl
from jax.experimental.pallas import tpu as pltpu

HIDDEN = 132        # logical hidden width (from the PyTorch module)
OUT = 6             # logical output width
HIDDEN_PAD = 256    # lane-dense hidden width (132 pads to 256 lanes anyway)
OUT_PAD = 128       # lane-dense width for the 3rd matmul (MXU-friendly)
OUT_STORE = 8       # narrow output writeback width (== full out-array last dim)
SMALL_BATCH_BYPASS = 256   # below this, plain jnp beats the pallas dispatch cost


def _round_up(n, m):
    return ((n + m - 1) // m) * m


def _mlp_kernel(x_ref, w1_ref, b1_ref, w2_ref, b2_ref, w3_ref, b3_ref, o_ref):
    # One batch tile; all three matmuls + ReLUs fused on-chip, f32 accumulation.
    x = x_ref[...].astype(jnp.bfloat16)
    z = jnp.dot(x, w1_ref[...], preferred_element_type=jnp.float32) + b1_ref[...]
    z = jnp.maximum(z, 0.0).astype(jnp.bfloat16)
    z = jnp.dot(z, w2_ref[...], preferred_element_type=jnp.float32) + b2_ref[...]
    z = jnp.maximum(z, 0.0).astype(jnp.bfloat16)
    z = jnp.dot(z, w3_ref[...], preferred_element_type=jnp.float32) + b3_ref[...]
    z = jnp.maximum(z, 0.0)
    # Store only the first 8 lanes (real outputs live in the first 6).
    o_ref[...] = z[:, :OUT_STORE].astype(o_ref.dtype)


def init_params(key, num_features):
    """Match torch init: weight ~ N(0, 1/sqrt(fan_in/2)), bias = 0.

    Stored transposed vs. PyTorch, i.e. (in_features, out_features), logical
    (unpadded) sizes, float32.
    """
    k1, k2, k3 = jax.random.split(key, 3)

    def make_layer(k, fan_in, fan_out):
        std = 1.0 / math.sqrt(fan_in / 2.0)
        w = std * jax.random.normal(k, (fan_in, fan_out), dtype=jnp.float32)
        b = jnp.zeros((1, fan_out), dtype=jnp.float32)
        return w, b

    w1, b1 = make_layer(k1, num_features, HIDDEN)
    w2, b2 = make_layer(k2, HIDDEN, HIDDEN)
    w3, b3 = make_layer(k3, HIDDEN, OUT)
    return {"w1": w1, "b1": b1, "w2": w2, "b2": b2, "w3": w3, "b3": b3}


def prepare_params(params):
    """Zero-pad params to lane-dense shapes; cast weights to bf16 (biases stay f32).

    Call ONCE at model-load time and reuse the result for every forward call.
    """
    f = params["w1"].shape[0]

    def pad2(a, rows, cols):
        out = jnp.zeros((rows, cols), dtype=jnp.float32)
        return out.at[: a.shape[0], : a.shape[1]].set(a)

    w1 = pad2(params["w1"], f, HIDDEN_PAD).astype(jnp.bfloat16)
    b1 = pad2(params["b1"], 1, HIDDEN_PAD)
    w2 = pad2(params["w2"], HIDDEN_PAD, HIDDEN_PAD).astype(jnp.bfloat16)
    b2 = pad2(params["b2"], 1, HIDDEN_PAD)
    w3 = pad2(params["w3"], HIDDEN_PAD, OUT_PAD).astype(jnp.bfloat16)
    b3 = pad2(params["b3"], 1, OUT_PAD)
    return (w1, b1, w2, b2, w3, b3)


def _fused_jnp_forward(x, prepared):
    """Small-batch path: same math/numerics as the kernel, no pallas dispatch."""
    w1, b1, w2, b2, w3, b3 = prepared
    z = jnp.maximum(jnp.dot(x.astype(jnp.bfloat16), w1,
                            preferred_element_type=jnp.float32) + b1, 0.0)
    z = jnp.maximum(jnp.dot(z.astype(jnp.bfloat16), w2,
                            preferred_element_type=jnp.float32) + b2, 0.0)
    z = jnp.maximum(jnp.dot(z.astype(jnp.bfloat16), w3,
                            preferred_element_type=jnp.float32) + b3, 0.0)
    return z[:, :OUT]


def full_connect_nn_forward(x, prepared, *, block_b=None, small_batch_bypass=True):
    """x: (B, num_features) float32 or bfloat16. Returns (B, 6) float32.

    `prepared` is the tuple returned by prepare_params() (padded / bf16 weights).
    """
    w1, b1, w2, b2, w3, b3 = prepared
    B, F = x.shape
    assert F == w1.shape[0], (F, w1.shape)

    if B == 0:
        return jnp.zeros((0, OUT), dtype=jnp.float32)

    if small_batch_bypass and block_b is None and B < SMALL_BATCH_BYPASS:
        return _fused_jnp_forward(x, prepared)

    if block_b is None:
        # Even number of grid steps (>=2 so v7x's two TensorCores both get
        # work), ~1024-row tiles for big batches, rounded to the 8-row sublane
        # granularity to minimize batch padding.
        n_tiles = 2 * max(1, pl.cdiv(B, 2048))
        block_b = _round_up(pl.cdiv(B, n_tiles), 8)
    b_pad = _round_up(B, block_b)
    if b_pad != B:
        x = jnp.pad(x, ((0, b_pad - B), (0, 0)))

    const = lambda i: (0, 0)  # weights / biases: same block every step -> VMEM-resident

    weight_bytes = sum(int(a.size) * a.dtype.itemsize for a in prepared)
    cost = pl.CostEstimate(
        flops=2 * b_pad * (F * HIDDEN_PAD + HIDDEN_PAD * HIDDEN_PAD + HIDDEN_PAD * OUT_PAD),
        transcendentals=0,
        bytes_accessed=int(x.size) * x.dtype.itemsize + weight_bytes + b_pad * OUT_STORE * 4,
    )

    out_padded = pl.pallas_call(
        _mlp_kernel,
        out_shape=jax.ShapeDtypeStruct((b_pad, OUT_STORE), jnp.float32),
        grid=(b_pad // block_b,),
        in_specs=[
            pl.BlockSpec((block_b, F), lambda i: (i, 0)),       # x tile (batch-tiled)
            pl.BlockSpec((F, HIDDEN_PAD), const),                # w1
            pl.BlockSpec((1, HIDDEN_PAD), const),                # b1
            pl.BlockSpec((HIDDEN_PAD, HIDDEN_PAD), const),       # w2
            pl.BlockSpec((1, HIDDEN_PAD), const),                # b2
            pl.BlockSpec((HIDDEN_PAD, OUT_PAD), const),          # w3
            pl.BlockSpec((1, OUT_PAD), const),                   # b3
        ],
        out_specs=pl.BlockSpec((block_b, OUT_STORE), lambda i: (i, 0)),
        compiler_params=pltpu.CompilerParams(
            dimension_semantics=("parallel",),   # batch tiles shard across v7x's 2 TCs
        ),
        cost_estimate=cost,
    )(x, w1, b1, w2, b2, w3, b3)

    return out_padded[:B, :OUT]


def _reference_forward(x, p):
    # Pure f32 reference matching the PyTorch forward (ReLU after every layer,
    # including fc3, exactly as in the original module).
    z = jnp.maximum(x @ p["w1"] + p["b1"], 0.0)
    z = jnp.maximum(z @ p["w2"] + p["b2"], 0.0)
    z = jnp.maximum(z @ p["w3"] + p["b3"], 0.0)
    return z


if __name__ == "__main__":
    key = jax.random.PRNGKey(0)
    k_params, k_x1, k_x2 = jax.random.split(key, 3)

    num_features = 32
    params = init_params(k_params, num_features)
    prepared = prepare_params(params)   # hoisted: pad/cast weights once at load time

    # Small batch: exercises the small-batch bypass path.
    x_small = jax.random.normal(k_x1, (8, num_features), dtype=jnp.float32)
    out_small = jax.block_until_ready(full_connect_nn_forward(x_small, prepared))
    ref_small = _reference_forward(x_small, params)
    assert out_small.shape == (8, OUT), out_small.shape
    # bf16 matmul inputs (f32 accumulation) -> loosened tolerance vs f32 reference.
    assert jnp.allclose(out_small, ref_small, atol=5e-2, rtol=5e-2), "small-batch mismatch"

    # Larger, non-multiple batch: exercises the Pallas kernel with batch padding
    # and a 2-step parallel grid (B=1030 -> block_b=520, b_pad=1040).
    x_big = jax.random.normal(k_x2, (1030, num_features), dtype=jnp.float32)
    out_big = jax.block_until_ready(full_connect_nn_forward(x_big, prepared))
    ref_big = _reference_forward(x_big, params)
    assert out_big.shape == (1030, OUT), out_big.shape
    assert jnp.allclose(out_big, ref_big, atol=5e-2, rtol=5e-2), "big-batch mismatch"

    print("KERNEL_OK")
</pallas_src>

<mosaic_0001>
module attributes {stable_mosaic.version = 11 : i64} {
  func.func @_mlp_kernel(%arg0: i32, %arg1: memref<520x32xf32, #tpu.memory_space<vmem>>, %arg2: memref<32x256xbf16, #tpu.memory_space<vmem>>, %arg3: memref<1x256xf32, #tpu.memory_space<vmem>>, %arg4: memref<256x256xbf16, #tpu.memory_space<vmem>>, %arg5: memref<1x256xf32, #tpu.memory_space<vmem>>, %arg6: memref<256x128xbf16, #tpu.memory_space<vmem>>, %arg7: memref<1x128xf32, #tpu.memory_space<vmem>>, %arg8: memref<520x8xf32, #tpu.memory_space<vmem>>) attributes {dimension_semantics = [#tpu.dimension_semantics<parallel>], iteration_bounds = array<i64: 2>, scalar_prefetch = 0 : i64, scratch_operands = 0 : i64, tpu.core_type = #tpu.core_type<tc>, window_params = [{transform_indices = @transform_0, window_bounds = array<i64: 520, 32>}, {pipeline_mode = #tpu.pipeline_mode<synchronous>, transform_indices = @transform_1, window_bounds = array<i64: 32, 256>}, {pipeline_mode = #tpu.pipeline_mode<synchronous>, transform_indices = @transform_2, window_bounds = array<i64: 1, 256>}, {pipeline_mode = #tpu.pipeline_mode<synchronous>, transform_indices = @transform_3, window_bounds = array<i64: 256, 256>}, {pipeline_mode = #tpu.pipeline_mode<synchronous>, transform_indices = @transform_4, window_bounds = array<i64: 1, 256>}, {pipeline_mode = #tpu.pipeline_mode<synchronous>, transform_indices = @transform_5, window_bounds = array<i64: 256, 128>}, {pipeline_mode = #tpu.pipeline_mode<synchronous>, transform_indices = @transform_6, window_bounds = array<i64: 1, 128>}, {transform_indices = @transform_7, window_bounds = array<i64: 520, 8>}]} {
    %c0 = arith.constant 0 : index
    %c0_0 = arith.constant 0 : index
    %0 = vector.load %arg1[%c0, %c0_0] : memref<520x32xf32, #tpu.memory_space<vmem>>, vector<520x32xf32>
    %1 = arith.truncf %0 : vector<520x32xf32> to vector<520x32xbf16>
    %c0_1 = arith.constant 0 : index
    %c0_2 = arith.constant 0 : index
    %2 = vector.load %arg2[%c0_1, %c0_2] : memref<32x256xbf16, #tpu.memory_space<vmem>>, vector<32x256xbf16>
    %cst = arith.constant dense<0.000000e+00> : vector<520x256xf32>
    %3 = tpu.matmul %1, %2, %cst {dimension_numbers = #tpu.dot_dimension_numbers<[1], [0], [0], [1], [0, 0, 1, 1], [], []>} : vector<520x32xbf16>, vector<32x256xbf16>, vector<520x256xf32> -> vector<520x256xf32>
    %c0_3 = arith.constant 0 : index
    %c0_4 = arith.constant 0 : index
    %4 = vector.load %arg3[%c0_3, %c0_4] : memref<1x256xf32, #tpu.memory_space<vmem>>, vector<1x256xf32>
    %5 = vector.broadcast %4 : vector<1x256xf32> to vector<520x256xf32>
    %6 = arith.addf %3, %5 : vector<520x256xf32>
    %cst_5 = arith.constant 0.000000e+00 : f32
    %7 = vector.broadcast %cst_5 : f32 to vector<520x256xf32>
    %8 = arith.maximumf %6, %7 : vector<520x256xf32>
    %9 = arith.truncf %8 : vector<520x256xf32> to vector<520x256xbf16>
    %c0_6 = arith.constant 0 : index
    %c0_7 = arith.constant 0 : index
    %10 = vector.load %arg4[%c0_6, %c0_7] : memref<256x256xbf16, #tpu.memory_space<vmem>>, vector<256x256xbf16>
    %cst_8 = arith.constant dense<0.000000e+00> : vector<520x256xf32>
    %11 = tpu.matmul %9, %10, %cst_8 {dimension_numbers = #tpu.dot_dimension_numbers<[1], [0], [0], [1], [0, 0, 1, 1], [], []>} : vector<520x256xbf16>, vector<256x256xbf16>, vector<520x256xf32> -> vector<520x256xf32>
    %c0_9 = arith.constant 0 : index
    %c0_10 = arith.constant 0 : index
    %12 = vector.load %arg5[%c0_9, %c0_10] : memref<1x256xf32, #tpu.memory_space<vmem>>, vector<1x256xf32>
    %13 = vector.broadcast %12 : vector<1x256xf32> to vector<520x256xf32>
    %14 = arith.addf %11, %13 : vector<520x256xf32>
    %cst_11 = arith.constant 0.000000e+00 : f32
    %15 = vector.broadcast %cst_11 : f32 to vector<520x256xf32>
    %16 = arith.maximumf %14, %15 : vector<520x256xf32>
    %17 = arith.truncf %16 : vector<520x256xf32> to vector<520x256xbf16>
    %c0_12 = arith.constant 0 : index
    %c0_13 = arith.constant 0 : index
    %18 = vector.load %arg6[%c0_12, %c0_13] : memref<256x128xbf16, #tpu.memory_space<vmem>>, vector<256x128xbf16>
    %cst_14 = arith.constant dense<0.000000e+00> : vector<520x128xf32>
    %19 = tpu.matmul %17, %18, %cst_14 {dimension_numbers = #tpu.dot_dimension_numbers<[1], [0], [0], [1], [0, 0, 1, 1], [], []>} : vector<520x256xbf16>, vector<256x128xbf16>, vector<520x128xf32> -> vector<520x128xf32>
    %c0_15 = arith.constant 0 : index
    %c0_16 = arith.constant 0 : index
    %20 = vector.load %arg7[%c0_15, %c0_16] : memref<1x128xf32, #tpu.memory_space<vmem>>, vector<1x128xf32>
    %21 = vector.broadcast %20 : vector<1x128xf32> to vector<520x128xf32>
    %22 = arith.addf %19, %21 : vector<520x128xf32>
    %cst_17 = arith.constant 0.000000e+00 : f32
    %23 = vector.broadcast %cst_17 : f32 to vector<520x128xf32>
    %24 = arith.maximumf %22, %23 : vector<520x128xf32>
    %25 = vector.extract_strided_slice %24 {offsets = [0, 0], sizes = [520, 8], strides = [1, 1]} : vector<520x128xf32> to vector<520x8xf32>
    %c0_18 = arith.constant 0 : index
    %c0_19 = arith.constant 0 : index
    %26 = vector.load %arg8[%c0_18, %c0_19] : memref<520x8xf32, #tpu.memory_space<vmem>>, vector<520x8xf32>
    tpu.vector_store %arg8[%c0_18, %c0_19], %25 {strides = array<i32>} : memref<520x8xf32, #tpu.memory_space<vmem>>, vector<520x8xf32>,
    return
  }
  func.func @transform_0(%arg0: i32) -> (i32, i32) {
    %c0_i32 = arith.constant 0 : i32
    %c0_i32_0 = arith.constant 0 : i32
    return %arg0, %c0_i32 : i32, i32
  }
  func.func @transform_1(%arg0: i32) -> (i32, i32) {
    %c0_i32 = arith.constant 0 : i32
    %c0_i32_0 = arith.constant 0 : i32
    %c0_i32_1 = arith.constant 0 : i32
    return %c0_i32, %c0_i32_0 : i32, i32
  }
  func.func @transform_2(%arg0: i32) -> (i32, i32) {
    %c0_i32 = arith.constant 0 : i32
    %c0_i32_0 = arith.constant 0 : i32
    %c0_i32_1 = arith.constant 0 : i32
    return %c0_i32, %c0_i32_0 : i32, i32
  }
  func.func @transform_3(%arg0: i32) -> (i32, i32) {
    %c0_i32 = arith.constant 0 : i32
    %c0_i32_0 = arith.constant 0 : i32
    %c0_i32_1 = arith.constant 0 : i32
    return %c0_i32, %c0_i32_0 : i32, i32
  }
  func.func @transform_4(%arg0: i32) -> (i32, i32) {
    %c0_i32 = arith.constant 0 : i32
    %c0_i32_0 = arith.constant 0 : i32
    %c0_i32_1 = arith.constant 0 : i32
    return %c0_i32, %c0_i32_0 : i32, i32
  }
  func.func @transform_5(%arg0: i32) -> (i32, i32) {
    %c0_i32 = arith.constant 0 : i32
    %c0_i32_0 = arith.constant 0 : i32
    %c0_i32_1 = arith.constant 0 : i32
    return %c0_i32, %c0_i32_0 : i32, i32
  }
  func.func @transform_6(%arg0: i32) -> (i32, i32) {
    %c0_i32 = arith.constant 0 : i32
    %c0_i32_0 = arith.constant 0 : i32
    %c0_i32_1 = arith.constant 0 : i32
    return %c0_i32, %c0_i32_0 : i32, i32
  }
  func.func @transform_7(%arg0: i32) -> (i32, i32) {
    %c0_i32 = arith.constant 0 : i32
    %c0_i32_0 = arith.constant 0 : i32
    return %arg0, %c0_i32 : i32, i32
  }
}

</mosaic_0001>

<llo_original>
// kernel: tpu_custom_call.1
$region0: #{tpu_custom_call.1}
  #allocation0 [shape = 'u32[]', space=smem, size = 0x4, offset = 0x4, fixed_abs, tag = 'smem constant byte address 0x4 - core index']
  #allocation1 [shape = 'u32[144,128]{1,0:T(1,128)}', space=vmem, size = 0x12000, scoped, tag = 'internal scratch']
  %s0 = inlined_call_operand.vmem [shape: f32[1040,32], index: 0, kind: input, shape index: {}]
  %s1 = inlined_call_operand.vmem [shape: bf16[32,256], index: 1, kind: input, shape index: {}]
  %s2 = inlined_call_operand.vmem [shape: f32[1,256], index: 2, kind: input, shape index: {}]
  %s3 = inlined_call_operand.vmem [shape: bf16[256,256], index: 3, kind: input, shape index: {}]
  %s4 = inlined_call_operand.vmem [shape: f32[1,256], index: 4, kind: input, shape index: {}]
  %s5 = inlined_call_operand.vmem [shape: bf16[256,128], index: 5, kind: input, shape index: {}]
  %s6 = inlined_call_operand.vmem [shape: f32[1,128], index: 6, kind: input, shape index: {}]
  %s7 = inlined_call_operand.vmem [shape: f32[1040,8], index: 7, kind: output, shape index: {}]
  %s8 = sld [smem:[#allocation0]]
  $region61: #{tpu_custom_call.1} parent=0
    _
  %s10 = ssub.s32 1, %s8
  %s11 = scalar_select 0, %s10, %s8
  loop: start=0, step=1, limit=4
  $region2: #{tpu_custom_call.1} parent=0 // loop_pre_header
    _
  $region3: #{tpu_custom_call.1} parent=0 // loop_header
    %s13 = sphi 0, %s17
    %p14 = scmp.ge.s32.totalorder %s13, 4
    %s23 = sphi 0, %s25
    %s26 = sphi 0, %s23
    %s27 = sphi 0, %s26
    %s43 = sphi 0, %s27
    %s47 = sphi 0, %s47
    %s49 = sphi 0, %s47
    %s50 = sphi 0, %s49
    %s64 = sphi 0, %s50
    %s68 = sphi 0, %s68
    %s70 = sphi 0, %s68
    %s71 = sphi 0, %s70
    %s85 = sphi 0, %s71
    %s89 = sphi 0, %s89
    %s91 = sphi 0, %s89
    %s92 = sphi 0, %s91
    %s106 = sphi 0, %s92
    %s110 = sphi 0, %s110
    %s112 = sphi 0, %s110
    %s113 = sphi 0, %s112
    %s127 = sphi 0, %s113
    %s131 = sphi 0, %s131
    %s133 = sphi 0, %s131
    %s134 = sphi 0, %s133
    %s148 = sphi 0, %s134
    %s152 = sphi 0, %s152
    %s154 = sphi 0, %s152
    %s155 = sphi 0, %s154
    %s169 = sphi 0, %s155
    %s175 = sphi 0, %s177
    %s178 = sphi 0, %s175
    %s179 = sphi 0, %s178
    %s195 = sphi 0, %s179
  $region4: #{tpu_custom_call.1} parent=0 // loop_header_branch
    %16 = sbr.rel (%p14) target = $region8
  $region5: #{tpu_custom_call.1} parent=0 // loop_body
    %s18 = ssub.s32 %s13, 1
    %s19 = ssub.s32 %s13, 2
    %s20 = sadd.s32 %s13, 1
    %s21 = ssub.s32 %s13, %s20
    %p22 = scmp.eq.s32.totalorder %s21, 0
    %s24 = sadd.s32 %s23, 1
    %s25 = scalar_select %p22, %s23, %s24
    %p28 = pneg %p22
    %p29 = scmp.eq.s32.totalorder %s13, 1
    %p30 = por %p28, %p29
    %p31 = scmp.ne.s32.totalorder %s23, %s26
    %p32 = scmp.eq.s32.totalorder %s13, 0
    %p33 = por %p31, %p32
    %p34 = scmp.ne.s32.totalorder %s23, %s26
    %p35 = scmp.eq.s32.totalorder %s18, 1
    %p36 = por %p34, %p35
    %p37 = scmp.ne.s32.totalorder %s26, %s27
    %p38 = scmp.eq.s32.totalorder %s18, 0
    %p39 = por %p37, %p38
    %p40 = scmp.ne.s32.totalorder %s26, %s27
    %p41 = scmp.eq.s32.totalorder %s19, 1
    %p42 = por %p40, %p41
    %p44 = scmp.ne.s32.totalorder %s27, %s43
    %p45 = scmp.eq.s32.totalorder %s19, 0
    %p46 = por %p44, %p45
    %s48 = sadd.s32 %s47, 1
    %p51 = scmp.eq.s32.totalorder %s13, 1
    %p52 = scmp.ne.s32.totalorder %s47, %s49
    %p53 = scmp.eq.s32.totalorder %s13, 0
    %p54 = por %p52, %p53
    %p55 = scmp.ne.s32.totalorder %s47, %s49
    %p56 = scmp.eq.s32.totalorder %s18, 1
    %p57 = por %p55, %p56
    %p58 = scmp.ne.s32.totalorder %s49, %s50
    %p59 = scmp.eq.s32.totalorder %s18, 0
    %p60 = por %p58, %p59
    %p61 = scmp.ne.s32.totalorder %s49, %s50
    %p62 = scmp.eq.s32.totalorder %s19, 1
    %p63 = por %p61, %p62
    %p65 = scmp.ne.s32.totalorder %s50, %s64
    %p66 = scmp.eq.s32.totalorder %s19, 0
    %p67 = por %p65, %p66
    %s69 = sadd.s32 %s68, 1
    %p72 = scmp.eq.s32.totalorder %s13, 1
    %p73 = scmp.ne.s32.totalorder %s68, %s70
    %p74 = scmp.eq.s32.totalorder %s13, 0
    %p75 = por %p73, %p74
    %p76 = scmp.ne.s32.totalorder %s68, %s70
    %p77 = scmp.eq.s32.totalorder %s18, 1
    %p78 = por %p76, %p77
    %p79 = scmp.ne.s32.totalorder %s70, %s71
    %p80 = scmp.eq.s32.totalorder %s18, 0
    %p81 = por %p79, %p80
    %p82 = scmp.ne.s32.totalorder %s70, %s71
    %p83 = scmp.eq.s32.totalorder %s19, 1
    %p84 = por %p82, %p83
    %p86 = scmp.ne.s32.totalorder %s71, %s85
    %p87 = scmp.eq.s32.totalorder %s19, 0
    %p88 = por %p86, %p87
    %s90 = sadd.s32 %s89, 1
    %p93 = scmp.eq.s32.totalorder %s13, 1
    %p94 = scmp.ne.s32.totalorder %s89, %s91
    %p95 = scmp.eq.s32.totalorder %s13, 0
    %p96 = por %p94, %p95
    %p97 = scmp.ne.s32.totalorder %s89, %s91
    %p98 = scmp.eq.s32.totalorder %s18, 1
    %p99 = por %p97, %p98
    %p100 = scmp.ne.s32.totalorder %s91, %s92
    %p101 = scmp.eq.s32.totalorder %s18, 0
    %p102 = por %p100, %p101
    %p103 = scmp.ne.s32.totalorder %s91, %s92
    %p104 = scmp.eq.s32.totalorder %s19, 1
    %p105 = por %p103, %p104
    %p107 = scmp.ne.s32.totalorder %s92, %s106
    %p108 = scmp.eq.s32.totalorder %s19, 0
    %p109 = por %p107, %p108
    %s111 = sadd.s32 %s110, 1
    %p114 = scmp.eq.s32.totalorder %s13, 1
    %p115 = scmp.ne.s32.totalorder %s110, %s112
    %p116 = scmp.eq.s32.totalorder %s13, 0
    %p117 = por %p115, %p116
    %p118 = scmp.ne.s32.totalorder %s110, %s112
    %p119 = scmp.eq.s32.totalorder %s18, 1
    %p120 = por %p118, %p119
    %p121 = scmp.ne.s32.totalorder %s112, %s113
    %p122 = scmp.eq.s32.totalorder %s18, 0
    %p123 = por %p121, %p122
    %p124 = scmp.ne.s32.totalorder %s112, %s113
    %p125 = scmp.eq.s32.totalorder %s19, 1
    %p126 = por %p124, %p125
    %p128 = scmp.ne.s32.totalorder %s113, %s127
    %p129 = scmp.eq.s32.totalorder %s19, 0
    %p130 = por %p128, %p129
    %s132 = sadd.s32 %s131, 1
    %p135 = scmp.eq.s32.totalorder %s13, 1
    %p136 = scmp.ne.s32.totalorder %s131, %s133
    %p137 = scmp.eq.s32.totalorder %s13, 0
    %p138 = por %p136, %p137
    %p139 = scmp.ne.s32.totalorder %s131, %s133
    %p140 = scmp.eq.s32.totalorder %s18, 1
    %p141 = por %p139, %p140
    %p142 = scmp.ne.s32.totalorder %s133, %s134
    %p143 = scmp.eq.s32.totalorder %s18, 0
    %p144 = por %p142, %p143
    %p145 = scmp.ne.s32.totalorder %s133, %s134
    %p146 = scmp.eq.s32.totalorder %s19, 1
    %p147 = por %p145, %p146
    %p149 = scmp.ne.s32.totalorder %s134, %s148
    %p150 = scmp.eq.s32.totalorder %s19, 0
    %p151 = por %p149, %p150
    %s153 = sadd.s32 %s152, 1
    %p156 = scmp.eq.s32.totalorder %s13, 1
    %p157 = scmp.ne.s32.totalorder %s152, %s154
    %p158 = scmp.eq.s32.totalorder %s13, 0
    %p159 = por %p157, %p158
    %p160 = scmp.ne.s32.totalorder %s152, %s154
    %p161 = scmp.eq.s32.totalorder %s18, 1
    %p162 = por %p160, %p161
    %p163 = scmp.ne.s32.totalorder %s154, %s155
    %p164 = scmp.eq.s32.totalorder %s18, 0
    %p165 = por %p163, %p164
    %p166 = scmp.ne.s32.totalorder %s154, %s155
    %p167 = scmp.eq.s32.totalorder %s19, 1
    %p168 = por %p166, %p167
    %p170 = scmp.ne.s32.totalorder %s155, %s169
    %p171 = scmp.eq.s32.totalorder %s19, 0
    %p172 = por %p170, %p171
    %s173 = ssub.s32 %s13, %s20
    %p174 = scmp.eq.s32.totalorder %s173, 0
    %s176 = sadd.s32 %s175, 1
    %s177 = scalar_select %p174, %s175, %s176
    %p180 = pneg %p174
    %p181 = scmp.eq.s32.totalorder %s13, 1
    %p182 = por %p180, %p181
    %p183 = scmp.ne.s32.totalorder %s175, %s178
    %p184 = scmp.eq.s32.totalorder %s13, 0
    %p185 = por %p183, %p184
    %p186 = scmp.ne.s32.totalorder %s175, %s178
    %p187 = scmp.eq.s32.totalorder %s18, 1
    %p188 = por %p186, %p187
    %p189 = scmp.ne.s32.totalorder %s178, %s179
    %p190 = scmp.eq.s32.totalorder %s18, 0
    %p191 = por %p189, %p190
    %p192 = scmp.ne.s32.totalorder %s178, %s179
    %p193 = scmp.eq.s32.totalorder %s19, 1
    %p194 = por %p192, %p193
    %p196 = scmp.ne.s32.totalorder %s179, %s195
    %p197 = scmp.eq.s32.totalorder %s19, 0
    %p198 = por %p196, %p197
    %p199 = scmp.le.s32.totalorder 1, %s13
    %p200 = scmp.lt.s32.totalorder %s13, 3
    %p201 = pnand %p199, %p200
    %p202 = pneg %p201
    // Predicated region
    $region9: #{tpu_custom_call.1} parent=5 // pred_check
      _
    $region10: #{tpu_custom_call.1} parent=5 // pred_check_branch
      %204 = sbr.rel (%p201) target = $region12
    $region11: #{tpu_custom_call.1} parent=5 // pred_region
      %s205 = ssub.s32 %s13, 1
      // Predicated region
      $region13: #{tpu_custom_call.1} parent=11 // pred_check
        %p206 = pneg %p60
      $region14: #{tpu_custom_call.1} parent=11 // pred_check_branch
        %208 = sbr.rel (%p206) target = $region16
      $region15: #{tpu_custom_call.1} parent=11 // pred_region
        _
      $region16: #{tpu_custom_call.1} parent=11 // pred_fallthru
        _
      // Predicated region
      $region17: #{tpu_custom_call.1} parent=11 // pred_check
        %p209 = pneg %p81
      $region18: #{tpu_custom_call.1} parent=11 // pred_check_branch
        %211 = sbr.rel (%p209) target = $region20
      $region19: #{tpu_custom_call.1} parent=11 // pred_region
        _
      $region20: #{tpu_custom_call.1} parent=11 // pred_fallthru
        _
      // Predicated region
      $region21: #{tpu_custom_call.1} parent=11 // pred_check
        %p212 = pneg %p102
      $region22: #{tpu_custom_call.1} parent=11 // pred_check_branch
        %214 = sbr.rel (%p212) target = $region24
      $region23: #{tpu_custom_call.1} parent=11 // pred_region
        _
      $region24: #{tpu_custom_call.1} parent=11 // pred_fallthru
        _
      // Predicated region
      $region25: #{tpu_custom_call.1} parent=11 // pred_check
        %p215 = pneg %p123
      $region26: #{tpu_custom_call.1} parent=11 // pred_check_branch
        %217 = sbr.rel (%p215) target = $region28
      $region27: #{tpu_custom_call.1} parent=11 // pred_region
        _
      $region28: #{tpu_custom_call.1} parent=11 // pred_fallthru
        _
      // Predicated region
      $region29: #{tpu_custom_call.1} parent=11 // pred_check
        %p218 = pneg %p144
      $region30: #{tpu_custom_call.1} parent=11 // pred_check_branch
        %220 = sbr.rel (%p218) target = $region32
      $region31: #{tpu_custom_call.1} parent=11 // pred_region
        _
      $region32: #{tpu_custom_call.1} parent=11 // pred_fallthru
        _
      // Predicated region
      $region33: #{tpu_custom_call.1} parent=11 // pred_check
        %p221 = pneg %p165
      $region34: #{tpu_custom_call.1} parent=11 // pred_check_branch
        %223 = sbr.rel (%p221) target = $region36
      $region35: #{tpu_custom_call.1} parent=11 // pred_region
        _
      $region36: #{tpu_custom_call.1} parent=11 // pred_fallthru
        _
    $region12: #{tpu_custom_call.1} parent=5 // pred_fallthru
      _
    %p224 = scmp.lt.s32.totalorder %s13, 2
    // Predicated region
    $region37: #{tpu_custom_call.1} parent=5 // pred_check
      %p225 = pneg %p224
    $region38: #{tpu_custom_call.1} parent=5 // pred_check_branch
      %227 = sbr.rel (%p225) target = $region40
    $region39: #{tpu_custom_call.1} parent=5 // pred_region
      // Predicated region
      $region41: #{tpu_custom_call.1} parent=39 // pred_check
        %p228 = pneg %p33
      $region42: #{tpu_custom_call.1} parent=39 // pred_check_branch
        %230 = sbr.rel (%p228) target = $region44
      $region43: #{tpu_custom_call.1} parent=39 // pred_region
        %s231 = smul.u32 65, %s13
        %p232 = scmp.lt.s32.totalorder %s231, 129
        %s233 = scalar_select %p232, %s231, 129
        %s234 = smul.addr %s233, 8
        %s235 = scalar_lea.vmem %s0, %s234
        %s236 = smul.u32 65, %s13
      $region44: #{tpu_custom_call.1} parent=39 // pred_fallthru
        _
    $region40: #{tpu_custom_call.1} parent=5 // pred_fallthru
      _
    %p237 = scmp.le.s32.totalorder 1, %s13
    %p238 = scmp.lt.s32.totalorder %s13, 3
    %p239 = pnand %p237, %p238
    %p240 = pneg %p239
    // Predicated region
    $region45: #{tpu_custom_call.1} parent=5 // pred_check
      _
    $region46: #{tpu_custom_call.1} parent=5 // pred_check_branch
      %242 = sbr.rel (%p239) target = $region48
    $region47: #{tpu_custom_call.1} parent=5 // pred_region
      %s243 = ssub.s32 %s13, 1
      %s244 = smul.u32 65, %s18
      %p245 = scmp.lt.s32.totalorder %s244, 129
      %s246 = scalar_select %p245, %s244, 129
      %s247 = smul.addr %s246, 8
      %s248 = scalar_lea.vmem %s0, %s247
      %p249 = pneg %p39
      %p250 = pneg %p36
      %p251 = pneg %p60
      %p252 = pneg %p57
      %p253 = pneg %p81
      %p254 = pneg %p78
      %p255 = pneg %p102
      %p256 = pneg %p99
      %p257 = pneg %p123
      %p258 = pneg %p120
      %p259 = pneg %p144
      %p260 = pneg %p141
      %p261 = pneg %p165
      %p262 = pneg %p162
      %p263 = pneg %p191
      %p264 = pneg %p188
      %s265 = smul.u32 65, %s18
      %p266 = scmp.lt.s32.totalorder %s265, 129
      %s267 = scalar_select %p266, %s265, 129
      %s268 = smul.addr %s267, 8
      %s269 = scalar_lea.vmem %s7, %s268
      %s270 = smul.u32 65, %s18
      %p271 = scmp.lt.s32.totalorder %s270, 129
      %s272 = scalar_select %p271, %s270, 129
      %s273 = smul.addr %s272, 8
      %s274 = scalar_lea.vmem %s0, %s273
      %s275 = smul.u32 65, %s18
      %s276 = smul.u32 65, %s18
      %p277 = scmp.lt.s32.totalorder %s276, 129
      %s278 = scalar_select %p277, %s276, 129
      %s279 = smul.addr %s278, 8
      %s280 = scalar_lea.vmem %s7, %s279
      %s281 = smul.u32 65, %s18
      %v283 = vld [vmem:[%s274] sm:$0xff]
      %v284 = vld [vmem:[%s274 + $0x8] sm:$0xff]
      %v285 = vld [vmem:[%s274 + $0x10] sm:$0xff]
      %v286 = vld [vmem:[%s274 + $0x18] sm:$0xff]
      %v287 = vld [vmem:[%s274 + $0x20] sm:$0xff]
      %v288 = vld [vmem:[%s274 + $0x28] sm:$0xff]
      %v289 = vld [vmem:[%s274 + $0x30] sm:$0xff]
      %v290 = vld [vmem:[%s274 + $0x38] sm:$0xff]
      %v291 = vld [vmem:[%s274 + $0x40] sm:$0xff]
      %v292 = vld [vmem:[%s274 + $0x48] sm:$0xff]
      %v293 = vld [vmem:[%s274 + $0x50] sm:$0xff]
      %v294 = vld [vmem:[%s274 + $0x58] sm:$0xff]
      %v295 = vld [vmem:[%s274 + $0x60] sm:$0xff]
      %v296 = vld [vmem:[%s274 + $0x68] sm:$0xff]
      %v297 = vld [vmem:[%s274 + $0x70] sm:$0xff]
      %v298 = vld [vmem:[%s274 + $0x78] sm:$0xff]
      %v299 = vld [vmem:[%s274 + $0x80] sm:$0xff]
      %v300 = vld [vmem:[%s274 + $0x88] sm:$0xff]
      %v301 = vld [vmem:[%s274 + $0x90] sm:$0xff]
      %v302 = vld [vmem:[%s274 + $0x98] sm:$0xff]
      %v303 = vld [vmem:[%s274 + $0xa0] sm:$0xff]
      %v304 = vld [vmem:[%s274 + $0xa8] sm:$0xff]
      %v305 = vld [vmem:[%s274 + $0xb0] sm:$0xff]
      %v306 = vld [vmem:[%s274 + $0xb8] sm:$0xff]
      %v307 = vld [vmem:[%s274 + $0xc0] sm:$0xff]
      %v308 = vld [vmem:[%s274 + $0xc8] sm:$0xff]
      %v309 = vld [vmem:[%s274 + $0xd0] sm:$0xff]
      %v310 = vld [vmem:[%s274 + $0xd8] sm:$0xff]
      %v311 = vld [vmem:[%s274 + $0xe0] sm:$0xff]
      %v312 = vld [vmem:[%s274 + $0xe8] sm:$0xff]
      %v313 = vld [vmem:[%s274 + $0xf0] sm:$0xff]
      %v314 = vld [vmem:[%s274 + $0xf8] sm:$0xff]
      %v315 = vld [vmem:[%s274 + $0x100] sm:$0xff]
      %v316 = vld [vmem:[%s274 + $0x108] sm:$0xff]
      %v317 = vld [vmem:[%s274 + $0x110] sm:$0xff]
      %v318 = vld [vmem:[%s274 + $0x118] sm:$0xff]
      %v319 = vld [vmem:[%s274 + $0x120] sm:$0xff]
      %v320 = vld [vmem:[%s274 + $0x128] sm:$0xff]
      %v321 = vld [vmem:[%s274 + $0x130] sm:$0xff]
      %v322 = vld [vmem:[%s274 + $0x138] sm:$0xff]
      %v323 = vld [vmem:[%s274 + $0x140] sm:$0xff]
      %v324 = vld [vmem:[%s274 + $0x148] sm:$0xff]
      %v325 = vld [vmem:[%s274 + $0x150] sm:$0xff]
      %v326 = vld [vmem:[%s274 + $0x158] sm:$0xff]
      %v327 = vld [vmem:[%s274 + $0x160] sm:$0xff]
      %v328 = vld [vmem:[%s274 + $0x168] sm:$0xff]
      %v329 = vld [vmem:[%s274 + $0x170] sm:$0xff]
      %v330 = vld [vmem:[%s274 + $0x178] sm:$0xff]
      %v331 = vld [vmem:[%s274 + $0x180] sm:$0xff]
      %v332 = vld [vmem:[%s274 + $0x188] sm:$0xff]
      %v333 = vld [vmem:[%s274 + $0x190] sm:$0xff]
      %v334 = vld [vmem:[%s274 + $0x198] sm:$0xff]
      %v335 = vld [vmem:[%s274 + $0x1a0] sm:$0xff]
      %v336 = vld [vmem:[%s274 + $0x1a8] sm:$0xff]
      %v337 = vld [vmem:[%s274 + $0x1b0] sm:$0xff]
      %v338 = vld [vmem:[%s274 + $0x1b8] sm:$0xff]
      %v339 = vld [vmem:[%s274 + $0x1c0] sm:$0xff]
      %v340 = vld [vmem:[%s274 + $0x1c8] sm:$0xff]
      %v341 = vld [vmem:[%s274 + $0x1d0] sm:$0xff]
      %v342 = vld [vmem:[%s274 + $0x1d8] sm:$0xff]
      %v343 = vld [vmem:[%s274 + $0x1e0] sm:$0xff]
      %v344 = vld [vmem:[%s274 + $0x1e8] sm:$0xff]
      %v345 = vld [vmem:[%s274 + $0x1f0] sm:$0xff]
      %v346 = vld [vmem:[%s274 + $0x1f8] sm:$0xff]
      %v347 = vld [vmem:[%s274 + $0x200] sm:$0xff]
      %v348 = vpack.c.bf16 %v284, %v283
      %v349 = vpack.c.bf16 %v286, %v285
      %v350 = vpack.c.bf16 %v288, %v287
      %v351 = vpack.c.bf16 %v290, %v289
      %v352 = vpack.c.bf16 %v292, %v291
      %v353 = vpack.c.bf16 %v294, %v293
      %v354 = vpack.c.bf16 %v296, %v295
      %v355 = vpack.c.bf16 %v298, %v297
      %v356 = vpack.c.bf16 %v300, %v299
      %v357 = vpack.c.bf16 %v302, %v301
      %v358 = vpack.c.bf16 %v304, %v303
      %v359 = vpack.c.bf16 %v306, %v305
      %v360 = vpack.c.bf16 %v308, %v307
      %v361 = vpack.c.bf16 %v310, %v309
      %v362 = vpack.c.bf16 %v312, %v311
      %v363 = vpack.c.bf16 %v314, %v313
      %v364 = vpack.c.bf16 %v316, %v315
      %v365 = vpack.c.bf16 %v318, %v317
      %v366 = vpack.c.bf16 %v320, %v319
      %v367 = vpack.c.bf16 %v322, %v321
      %v368 = vpack.c.bf16 %v324, %v323
      %v369 = vpack.c.bf16 %v326, %v325
      %v370 = vpack.c.bf16 %v328, %v327
      %v371 = vpack.c.bf16 %v330, %v329
      %v372 = vpack.c.bf16 %v332, %v331
      %v373 = vpack.c.bf16 %v334, %v333
      %v374 = vpack.c.bf16 %v336, %v335
      %v375 = vpack.c.bf16 %v338, %v337
      %v376 = vpack.c.bf16 %v340, %v339
      %v377 = vpack.c.bf16 %v342, %v341
      %v378 = vpack.c.bf16 %v344, %v343
      %v379 = vpack.c.bf16 %v346, %v345
      %v380 = vpack.c.bf16 %v347, %v347
      %v381 = vld [vmem:[%s1] sm:$0xff]
      %v382 = vld [vmem:[%s1 + $0x8] sm:$0xff]
      %v383 = vld [vmem:[%s1 + $0x10] sm:$0xff]
      %v384 = vld [vmem:[%s1 + $0x18] sm:$0xff]
      %v385 = vld [vmem:[%s2] sm:$0x3]
      %v387 = vlaneseq
      %v388 = vshrl.u32 %v387, 7
      %v389 = vsub.s32 0, %v388
      %v390 = vrot.slane %v385, %v389
      %v391 = vlaneseq
      %v392 = vshrl.u32 %v391, 7
      %v393 = vsub.s32 1, %v392
      %v394 = vrot.slane %v385, %v393
      %v401 = vunpack.c.l.b16 %v381
      %v402 = vunpack.c.h.b16 %v381
      %v403 = vunpack.c.l.b16 %v382
      %v404 = vunpack.c.h.b16 %v382
      %v405 = vunpack.c.l.b16 %v383
      %v406 = vunpack.c.h.b16 %v383
      %v407 = vunpack.c.l.b16 %v384
      %v408 = vunpack.c.h.b16 %v384
      %v409 = vpack.c.b16 %v403, %v401
      %v410 = vpack.c.b16 %v404, %v402
      %v411 = vpack.c.b16 %v407, %v405
      %v412 = vpack.c.b16 %v408, %v406
      %vm417 = vcmask 261120
      %v419 = vsel %vm417, %v348, 0
      %v422 = vsel %vm417, %v349, 0
      %v425 = vsel %vm417, %v350, 0
      %v428 = vsel %vm417, %v351, 0
      %v431 = vsel %vm417, %v352, 0
      %v434 = vsel %vm417, %v353, 0
      %v437 = vsel %vm417, %v354, 0
      %v440 = vsel %vm417, %v355, 0
      %v443 = vsel %vm417, %v356, 0
      %v446 = vsel %vm417, %v357, 0
      %v449 = vsel %vm417, %v358, 0
      %v452 = vsel %vm417, %v359, 0
      %v455 = vsel %vm417, %v360, 0
      %v458 = vsel %vm417, %v361, 0
      %v461 = vsel %vm417, %v362, 0
      %v464 = vsel %vm417, %v363, 0
      %v467 = vsel %vm417, %v364, 0
      %v470 = vsel %vm417, %v365, 0
      %v473 = vsel %vm417, %v366, 0
      %v476 = vsel %vm417, %v367, 0
      %v479 = vsel %vm417, %v368, 0
      %v482 = vsel %vm417, %v369, 0
      %v485 = vsel %vm417, %v370, 0
      %v488 = vsel %vm417, %v371, 0
      %v491 = vsel %vm417, %v372, 0
      %v494 = vsel %vm417, %v373, 0
      %v497 = vsel %vm417, %v374, 0
      %v500 = vsel %vm417, %v375, 0
      %v503 = vsel %vm417, %v376, 0
      %v506 = vsel %vm417, %v377, 0
      %v509 = vsel %vm417, %v378, 0
      %v512 = vsel %vm417, %v379, 0
      %v515 = vsel %vm417, %v380, 0
      %517 = vmatprep.subr.bf16.mxu0 %v410
      %518 = vmatpush1.bf16.msra.mxu0 %v409
      %519 = vmatprep.subr.bf16.mxu0 %v412
      %520 = vmatpush1.bf16.msra.mxu0 %v411
      %521 = vmatprep.subr.bf16.mxu0 0
      %522 = vmatpush1.bf16.msra.mxu0 0
      %523 = vmatprep.subr.bf16.mxu0 0
      %524 = vmatpush1.bf16.msra.mxu0 0
      %525 = vmatprep.subr.bf16.mxu0 0
      %526 = vmatpush1.bf16.msra.mxu0 0
      %527 = vmatprep.subr.bf16.mxu0 0
      %528 = vmatpush1.bf16.msra.mxu0 0
      %529 = vmatprep.subr.bf16.mxu0 0
      %530 = vmatpush1.bf16.msra.mxu0 0
      %531 = vmatprep.subr.bf16.mxu0 0
      %532 = vmatpush1.bf16.msra.mxu0 0
      %533 = vmatprep.subr.bf16.mxu0 0
      %534 = vmatpush1.bf16.msra.mxu0 0
      %535 = vmatprep.subr.bf16.mxu0 0
      %536 = vmatpush1.bf16.msra.mxu0 0
      %537 = vmatprep.subr.bf16.mxu0 0
      %538 = vmatpush1.bf16.msra.mxu0 0
      %539 = vmatprep.subr.bf16.mxu0 0
      %540 = vmatpush1.bf16.msra.mxu0 0
      %541 = vmatprep.subr.bf16.mxu0 0
      %542 = vmatpush1.bf16.msra.mxu0 0
      %543 = vmatprep.subr.bf16.mxu0 0
      %544 = vmatpush1.bf16.msra.mxu0 0
      %545 = vmatprep.subr.bf16.mxu0 0
      %546 = vmatpush1.bf16.msra.mxu0 0
      %547 = vmatprep.subr.bf16.mxu0 0
      %548 = vmatpush1.bf16.msra.mxu0 0
      %549 = vmatprep.mubr.bf16.mxu0 0
      %550 = vmatmul.mubr.bf16.gmra.mrb[0].mxu0 %v419
      %v551 = vpop.f32.mrb[0].mxu0
      %v552 = vadd.f32 %v390, %v551
      %v553 = vpop.f32.mrb[0].mxu0
      %v554 = vadd.f32 %v394, %v553
      %v555 = vpop.f32.mrb[0].mxu0
      %v556 = vadd.f32 %v390, %v555
      %v557 = vpop.f32.mrb[0].mxu0
      %v558 = vadd.f32 %v394, %v557
      %559 = vmatprep.mubr.bf16.mxu0 0
      %560 = vmatmul.mubr.bf16.gmra.mrb[0].mxu0 %v422
      %v561 = vpop.f32.mrb[0].mxu0
      %v562 = vadd.f32 %v390, %v561
      %v563 = vpop.f32.mrb[0].mxu0
      %v564 = vadd.f32 %v394, %v563
      %v565 = vpop.f32.mrb[0].mxu0
      %v566 = vadd.f32 %v390, %v565
      %v567 = vpop.f32.mrb[0].mxu0
      %v568 = vadd.f32 %v394, %v567
      %569 = vmatprep.mubr.bf16.mxu0 0
      %570 = vmatmul.mubr.bf16.gmra.mrb[0].mxu0 %v425
      %v571 = vpop.f32.mrb[0].mxu0
      %v572 = vadd.f32 %v390, %v571
      %v573 = vpop.f32.mrb[0].mxu0
      %v574 = vadd.f32 %v394, %v573
      %v575 = vpop.f32.mrb[0].mxu0
      %v576 = vadd.f32 %v390, %v575
      %v577 = vpop.f32.mrb[0].mxu0
      %v578 = vadd.f32 %v394, %v577
      %579 = vmatprep.mubr.bf16.mxu0 0
      %580 = vmatmul.mubr.bf16.gmra.mrb[0].mxu0 %v428
      %v581 = vpop.f32.mrb[0].mxu0
      %v582 = vadd.f32 %v390, %v581
      %v583 = vpop.f32.mrb[0].mxu0
      %v584 = vadd.f32 %v394, %v583
      %v585 = vpop.f32.mrb[0].mxu0
      %v586 = vadd.f32 %v390, %v585
      %v587 = vpop.f32.mrb[0].mxu0
      %v588 = vadd.f32 %v394, %v587
      %589 = vmatprep.mubr.bf16.mxu0 0
      %590 = vmatmul.mubr.bf16.gmra.mrb[0].mxu0 %v431
      %v591 = vpop.f32.mrb[0].mxu0
      %v592 = vadd.f32 %v390, %v591
      %v593 = vpop.f32.mrb[0].mxu0
      %v594 = vadd.f32 %v394, %v593
      %v595 = vpop.f32.mrb[0].mxu0
      %v596 = vadd.f32 %v390, %v595
      %v597 = vpop.f32.mrb[0].mxu0
      %v598 = vadd.f32 %v394, %v597
      %599 = vmatprep.mubr.bf16.mxu0 0
      %600 = vmatmul.mubr.bf16.gmra.mrb[0].mxu0 %v434
      %v601 = vpop.f32.mrb[0].mxu0
      %v602 = vadd.f32 %v390, %v601
      %v603 = vpop.f32.mrb[0].mxu0
      %v604 = vadd.f32 %v394, %v603
      %v605 = vpop.f32.mrb[0].mxu0
      %v606 = vadd.f32 %v390, %v605
      %v607 = vpop.f32.mrb[0].mxu0
      %v608 = vadd.f32 %v394, %v607
      %609 = vmatprep.mubr.bf16.mxu0 0
      %610 = vmatmul.mubr.bf16.gmra.mrb[0].mxu0 %v437
      %v611 = vpop.f32.mrb[0].mxu0
      %v612 = vadd.f32 %v390, %v611
      %v613 = vpop.f32.mrb[0].mxu0
      %v614 = vadd.f32 %v394, %v613
      %v615 = vpop.f32.mrb[0].mxu0
      %v616 = vadd.f32 %v390, %v615
      %v617 = vpop.f32.mrb[0].mxu0
      %v618 = vadd.f32 %v394, %v617
      %619 = vmatprep.mubr.bf16.mxu0 0
      %620 = vmatmul.mubr.bf16.gmra.mrb[0].mxu0 %v440
      %v621 = vpop.f32.mrb[0].mxu0
      %v622 = vadd.f32 %v390, %v621
      %v623 = vpop.f32.mrb[0].mxu0
      %v624 = vadd.f32 %v394, %v623
      %v625 = vpop.f32.mrb[0].mxu0
      %v626 = vadd.f32 %v390, %v625
      %v627 = vpop.f32.mrb[0].mxu0
      %v628 = vadd.f32 %v394, %v627
      %629 = vmatprep.mubr.bf16.mxu0 0
      %630 = vmatmul.mubr.bf16.gmra.mrb[0].mxu0 %v443
      %v631 = vpop.f32.mrb[0].mxu0
      %v632 = vadd.f32 %v390, %v631
      %v633 = vpop.f32.mrb[0].mxu0
      %v634 = vadd.f32 %v394, %v633
      %v635 = vpop.f32.mrb[0].mxu0
      %v636 = vadd.f32 %v390, %v635
      %v637 = vpop.f32.mrb[0].mxu0
      %v638 = vadd.f32 %v394, %v637
      %639 = vmatprep.mubr.bf16.mxu0 0
      %640 = vmatmul.mubr.bf16.gmra.mrb[0].mxu0 %v446
      %v641 = vpop.f32.mrb[0].mxu0
      %v642 = vadd.f32 %v390, %v641
      %v643 = vpop.f32.mrb[0].mxu0
      %v644 = vadd.f32 %v394, %v643
      %v645 = vpop.f32.mrb[0].mxu0
      %v646 = vadd.f32 %v390, %v645
      %v647 = vpop.f32.mrb[0].mxu0
      %v648 = vadd.f32 %v394, %v647
      %649 = vmatprep.mubr.bf16.mxu0 0
      %650 = vmatmul.mubr.bf16.gmra.mrb[0].mxu0 %v449
      %v651 = vpop.f32.mrb[0].mxu0
      %v652 = vadd.f32 %v390, %v651
      %v653 = vpop.f32.mrb[0].mxu0
      %v654 = vadd.f32 %v394, %v653
      %v655 = vpop.f32.mrb[0].mxu0
      %v656 = vadd.f32 %v390, %v655
      %v657 = vpop.f32.mrb[0].mxu0
      %v658 = vadd.f32 %v394, %v657
      %659 = vmatprep.mubr.bf16.mxu0 0
      %660 = vmatmul.mubr.bf16.gmra.mrb[0].mxu0 %v452
      %v661 = vpop.f32.mrb[0].mxu0
      %v662 = vadd.f32 %v390, %v661
      %v663 = vpop.f32.mrb[0].mxu0
      %v664 = vadd.f32 %v394, %v663
      %v665 = vpop.f32.mrb[0].mxu0
      %v666 = vadd.f32 %v390, %v665
      %v667 = vpop.f32.mrb[0].mxu0
      %v668 = vadd.f32 %v394, %v667
      %669 = vmatprep.mubr.bf16.mxu0 0
      %670 = vmatmul.mubr.bf16.gmra.mrb[0].mxu0 %v455
      %v671 = vpop.f32.mrb[0].mxu0
      %v672 = vadd.f32 %v390, %v671
      %v673 = vpop.f32.mrb[0].mxu0
      %v674 = vadd.f32 %v394, %v673
      %v675 = vpop.f32.mrb[0].mxu0
      %v676 = vadd.f32 %v390, %v675
      %v677 = vpop.f32.mrb[0].mxu0
      %v678 = vadd.f32 %v394, %v677
      %679 = vmatprep.mubr.bf16.mxu0 0
      %680 = vmatmul.mubr.bf16.gmra.mrb[0].mxu0 %v458
      %v681 = vpop.f32.mrb[0].mxu0
      %v682 = vadd.f32 %v390, %v681
      %v683 = vpop.f32.mrb[0].mxu0
      %v684 = vadd.f32 %v394, %v683
      %v685 = vpop.f32.mrb[0].mxu0
      %v686 = vadd.f32 %v390, %v685
      %v687 = vpop.f32.mrb[0].mxu0
      %v688 = vadd.f32 %v394, %v687
      %689 = vmatprep.mubr.bf16.mxu0 0
      %690 = vmatmul.mubr.bf16.gmra.mrb[0].mxu0 %v461
      %v691 = vpop.f32.mrb[0].mxu0
      %v692 = vadd.f32 %v390, %v691
      %v693 = vpop.f32.mrb[0].mxu0
      %v694 = vadd.f32 %v394, %v693
      %v695 = vpop.f32.mrb[0].mxu0
      %v696 = vadd.f32 %v390, %v695
      %v697 = vpop.f32.mrb[0].mxu0
      %v698 = vadd.f32 %v394, %v697
      %699 = vmatprep.mubr.bf16.mxu0 0
      %700 = vmatmul.mubr.bf16.gmra.mrb[0].mxu0 %v464
      %v701 = vpop.f32.mrb[0].mxu0
      %v702 = vadd.f32 %v390, %v701
      %v703 = vpop.f32.mrb[0].mxu0
      %v704 = vadd.f32 %v394, %v703
      %v705 = vpop.f32.mrb[0].mxu0
      %v706 = vadd.f32 %v390, %v705
      %v707 = vpop.f32.mrb[0].mxu0
      %v708 = vadd.f32 %v394, %v707
      %709 = vmatprep.mubr.bf16.mxu0 0
      %710 = vmatmul.mubr.bf16.gmra.mrb[0].mxu0 %v467
      %v711 = vpop.f32.mrb[0].mxu0
      %v712 = vadd.f32 %v390, %v711
      %v713 = vpop.f32.mrb[0].mxu0
      %v714 = vadd.f32 %v394, %v713
      %v715 = vpop.f32.mrb[0].mxu0
      %v716 = vadd.f32 %v390, %v715
      %v717 = vpop.f32.mrb[0].mxu0
      %v718 = vadd.f32 %v394, %v717
      %719 = vmatprep.mubr.bf16.mxu0 0
      %720 = vmatmul.mubr.bf16.gmra.mrb[0].mxu0 %v470
      %v721 = vpop.f32.mrb[0].mxu0
      %v722 = vadd.f32 %v390, %v721
      %v723 = vpop.f32.mrb[0].mxu0
      %v724 = vadd.f32 %v394, %v723
      %v725 = vpop.f32.mrb[0].mxu0
      %v726 = vadd.f32 %v390, %v725
      %v727 = vpop.f32.mrb[0].mxu0
      %v728 = vadd.f32 %v394, %v727
      %729 = vmatprep.mubr.bf16.mxu0 0
      %730 = vmatmul.mubr.bf16.gmra.mrb[0].mxu0 %v473
      %v731 = vpop.f32.mrb[0].mxu0
      %v732 = vadd.f32 %v390, %v731
      %v733 = vpop.f32.mrb[0].mxu0
      %v734 = vadd.f32 %v394, %v733
      %v735 = vpop.f32.mrb[0].mxu0
      %v736 = vadd.f32 %v390, %v735
      %v737 = vpop.f32.mrb[0].mxu0
      %v738 = vadd.f32 %v394, %v737
      %739 = vmatprep.mubr.bf16.mxu0 0
      %740 = vmatmul.mubr.bf16.gmra.mrb[0].mxu0 %v476
      %v741 = vpop.f32.mrb[0].mxu0
      %v742 = vadd.f32 %v390, %v741
      %v743 = vpop.f32.mrb[0].mxu0
      %v744 = vadd.f32 %v394, %v743
      %v745 = vpop.f32.mrb[0].mxu0
      %v746 = vadd.f32 %v390, %v745
      %v747 = vpop.f32.mrb[0].mxu0
      %v748 = vadd.f32 %v394, %v747
      %749 = vmatprep.mubr.bf16.mxu0 0
      %750 = vmatmul.mubr.bf16.gmra.mrb[0].mxu0 %v479
      %v751 = vpop.f32.mrb[0].mxu0
      %v752 = vadd.f32 %v390, %v751
      %v753 = vpop.f32.mrb[0].mxu0
      %v754 = vadd.f32 %v394, %v753
      %v755 = vpop.f32.mrb[0].mxu0
      %v756 = vadd.f32 %v390, %v755
      %v757 = vpop.f32.mrb[0].mxu0
      %v758 = vadd.f32 %v394, %v757
      %759 = vmatprep.mubr.bf16.mxu0 0
      %760 = vmatmul.mubr.bf16.gmra.mrb[0].mxu0 %v482
      %v761 = vpop.f32.mrb[0].mxu0
      %v762 = vadd.f32 %v390, %v761
      %v763 = vpop.f32.mrb[0].mxu0
      %v764 = vadd.f32 %v394, %v763
      %v765 = vpop.f32.mrb[0].mxu0
      %v766 = vadd.f32 %v390, %v765
      %v767 = vpop.f32.mrb[0].mxu0
      %v768 = vadd.f32 %v394, %v767
      %769 = vmatprep.mubr.bf16.mxu0 0
      %770 = vmatmul.mubr.bf16.gmra.mrb[0].mxu0 %v485
      %v771 = vpop.f32.mrb[0].mxu0
      %v772 = vadd.f32 %v390, %v771
      %v773 = vpop.f32.mrb[0].mxu0
      %v774 = vadd.f32 %v394, %v773
      %v775 = vpop.f32.mrb[0].mxu0
      %v776 = vadd.f32 %v390, %v775
      %v777 = vpop.f32.mrb[0].mxu0
      %v778 = vadd.f32 %v394, %v777
      %779 = vmatprep.mubr.bf16.mxu0 0
      %780 = vmatmul.mubr.bf16.gmra.mrb[0].mxu0 %v488
      %v781 = vpop.f32.mrb[0].mxu0
      %v782 = vadd.f32 %v390, %v781
      %v783 = vpop.f32.mrb[0].mxu0
      %v784 = vadd.f32 %v394, %v783
      %v785 = vpop.f32.mrb[0].mxu0
      %v786 = vadd.f32 %v390, %v785
      %v787 = vpop.f32.mrb[0].mxu0
      %v788 = vadd.f32 %v394, %v787
      %789 = vmatprep.mubr.bf16.mxu0 0
      %790 = vmatmul.mubr.bf16.gmra.mrb[0].mxu0 %v491
      %v791 = vpop.f32.mrb[0].mxu0
      %v792 = vadd.f32 %v390, %v791
      %v793 = vpop.f32.mrb[0].mxu0
      %v794 = vadd.f32 %v394, %v793
      %v795 = vpop.f32.mrb[0].mxu0
      %v796 = vadd.f32 %v390, %v795
      %v797 = vpop.f32.mrb[0].mxu0
      %v798 = vadd.f32 %v394, %v797
      %799 = vmatprep.mubr.bf16.mxu0 0
      %800 = vmatmul.mubr.bf16.gmra.mrb[0].mxu0 %v494
      %v801 = vpop.f32.mrb[0].mxu0
      %v802 = vadd.f32 %v390, %v801
      %v803 = vpop.f32.mrb[0].mxu0
      %v804 = vadd.f32 %v394, %v803
      %v805 = vpop.f32.mrb[0].mxu0
      %v806 = vadd.f32 %v390, %v805
      %v807 = vpop.f32.mrb[0].mxu0
      %v808 = vadd.f32 %v394, %v807
      %809 = vmatprep.mubr.bf16.mxu0 0
      %810 = vmatmul.mubr.bf16.gmra.mrb[0].mxu0 %v497
      %v811 = vpop.f32.mrb[0].mxu0
      %v812 = vadd.f32 %v390, %v811
      %v813 = vpop.f32.mrb[0].mxu0
      %v814 = vadd.f32 %v394, %v813
      %v815 = vpop.f32.mrb[0].mxu0
      %v816 = vadd.f32 %v390, %v815
      %v817 = vpop.f32.mrb[0].mxu0
      %v818 = vadd.f32 %v394, %v817
      %819 = vmatprep.mubr.bf16.mxu0 0
      %820 = vmatmul.mubr.bf16.gmra.mrb[0].mxu0 %v500
      %v821 = vpop.f32.mrb[0].mxu0
      %v822 = vadd.f32 %v390, %v821
      %v823 = vpop.f32.mrb[0].mxu0
      %v824 = vadd.f32 %v394, %v823
      %v825 = vpop.f32.mrb[0].mxu0
      %v826 = vadd.f32 %v390, %v825
      %v827 = vpop.f32.mrb[0].mxu0
      %v828 = vadd.f32 %v394, %v827
      %829 = vmatprep.mubr.bf16.mxu0 0
      %830 = vmatmul.mubr.bf16.gmra.mrb[0].mxu0 %v503
      %v831 = vpop.f32.mrb[0].mxu0
      %v832 = vadd.f32 %v390, %v831
      %v833 = vpop.f32.mrb[0].mxu0
      %v834 = vadd.f32 %v394, %v833
      %v835 = vpop.f32.mrb[0].mxu0
      %v836 = vadd.f32 %v390, %v835
      %v837 = vpop.f32.mrb[0].mxu0
      %v838 = vadd.f32 %v394, %v837
      %839 = vmatprep.mubr.bf16.mxu0 0
      %840 = vmatmul.mubr.bf16.gmra.mrb[0].mxu0 %v506
      %v841 = vpop.f32.mrb[0].mxu0
      %v842 = vadd.f32 %v390, %v841
      %v843 = vpop.f32.mrb[0].mxu0
      %v844 = vadd.f32 %v394, %v843
      %v845 = vpop.f32.mrb[0].mxu0
      %v846 = vadd.f32 %v390, %v845
      %v847 = vpop.f32.mrb[0].mxu0
      %v848 = vadd.f32 %v394, %v847
      %849 = vmatprep.mubr.bf16.mxu0 0
      %850 = vmatmul.mubr.bf16.gmra.mrb[0].mxu0 %v509
      %v851 = vpop.f32.mrb[0].mxu0
      %v852 = vadd.f32 %v390, %v851
      %v853 = vpop.f32.mrb[0].mxu0
      %v854 = vadd.f32 %v394, %v853
      %v855 = vpop.f32.mrb[0].mxu0
      %v856 = vadd.f32 %v390, %v855
      %v857 = vpop.f32.mrb[0].mxu0
      %v858 = vadd.f32 %v394, %v857
      %859 = vmatprep.mubr.bf16.mxu0 0
      %860 = vmatmul.mubr.bf16.gmra.mrb[0].mxu0 %v512
      %v861 = vpop.f32.mrb[0].mxu0
      %v862 = vadd.f32 %v390, %v861
      %v863 = vpop.f32.mrb[0].mxu0
      %v864 = vadd.f32 %v394, %v863
      %v865 = vpop.f32.mrb[0].mxu0
      %v866 = vadd.f32 %v390, %v865
      %v867 = vpop.f32.mrb[0].mxu0
      %v868 = vadd.f32 %v394, %v867
      %869 = vmatprep.mubr.bf16.mxu0 0
      %870 = vmatmul.mubr.bf16.gmra.mrb[0].mxu0 %v515
      %v871 = vpop.f32.mrb[0].mxu0
      %v872 = vadd.f32 %v390, %v871
      %v873 = vpop.f32.mrb[0].mxu0
      %v874 = vadd.f32 %v394, %v873
      %v875 = vpop.f32.mrb[0].mxu0
      %v876 = vpop.f32.mrb[0].mxu0
      %877 = vdwg.mxu0
      %v878 = vmax.f32 %v552, 0.0
      %v879 = vmax.f32 %v554, 0.0
      %v880 = vmax.f32 %v556, 0.0
      %v881 = vmax.f32 %v558, 0.0
      %v882 = vmax.f32 %v562, 0.0
      %v883 = vmax.f32 %v564, 0.0
      %v884 = vmax.f32 %v566, 0.0
      %v885 = vmax.f32 %v568, 0.0
      %v886 = vmax.f32 %v572, 0.0
      %v887 = vmax.f32 %v574, 0.0
      %v888 = vmax.f32 %v576, 0.0
      %v889 = vmax.f32 %v578, 0.0
      %v890 = vmax.f32 %v582, 0.0
      %v891 = vmax.f32 %v584, 0.0
      %v892 = vmax.f32 %v586, 0.0
      %v893 = vmax.f32 %v588, 0.0
      %v894 = vmax.f32 %v592, 0.0
      %v895 = vmax.f32 %v594, 0.0
      %v896 = vmax.f32 %v596, 0.0
      %v897 = vmax.f32 %v598, 0.0
      %v898 = vmax.f32 %v602, 0.0
      %v899 = vmax.f32 %v604, 0.0
      %v900 = vmax.f32 %v606, 0.0
      %v901 = vmax.f32 %v608, 0.0
      %v902 = vmax.f32 %v612, 0.0
      %v903 = vmax.f32 %v614, 0.0
      %v904 = vmax.f32 %v616, 0.0
      %v905 = vmax.f32 %v618, 0.0
      %v906 = vmax.f32 %v622, 0.0
      %v907 = vmax.f32 %v624, 0.0
      %v908 = vmax.f32 %v626, 0.0
      %v909 = vmax.f32 %v628, 0.0
      %v910 = vmax.f32 %v632, 0.0
      %v911 = vmax.f32 %v634, 0.0
      %v912 = vmax.f32 %v636, 0.0
      %v913 = vmax.f32 %v638, 0.0
      %v914 = vmax.f32 %v642, 0.0
      %v915 = vmax.f32 %v644, 0.0
      %v916 = vmax.f32 %v646, 0.0
      %v917 = vmax.f32 %v648, 0.0
      %v918 = vmax.f32 %v652, 0.0
      %v919 = vmax.f32 %v654, 0.0
      %v920 = vmax.f32 %v656, 0.0
      %v921 = vmax.f32 %v658, 0.0
      %v922 = vmax.f32 %v662, 0.0
      %v923 = vmax.f32 %v664, 0.0
      %v924 = vmax.f32 %v666, 0.0
      %v925 = vmax.f32 %v668, 0.0
      %v926 = vmax.f32 %v672, 0.0
      %v927 = vmax.f32 %v674, 0.0
      %v928 = vmax.f32 %v676, 0.0
      %v929 = vmax.f32 %v678, 0.0
      %v930 = vmax.f32 %v682, 0.0
      %v931 = vmax.f32 %v684, 0.0
      %v932 = vmax.f32 %v686, 0.0
      %v933 = vmax.f32 %v688, 0.0
      %v934 = vmax.f32 %v692, 0.0
      %v935 = vmax.f32 %v694, 0.0
      %v936 = vmax.f32 %v696, 0.0
      %v937 = vmax.f32 %v698, 0.0
      %v938 = vmax.f32 %v702, 0.0
      %v939 = vmax.f32 %v704, 0.0
      %v940 = vmax.f32 %v706, 0.0
      %v941 = vmax.f32 %v708, 0.0
      %v942 = vmax.f32 %v712, 0.0
      %v943 = vmax.f32 %v714, 0.0
      %v944 = vmax.f32 %v716, 0.0
      %v945 = vmax.f32 %v718, 0.0
      %v946 = vmax.f32 %v722, 0.0
      %v947 = vmax.f32 %v724, 0.0
      %v948 = vmax.f32 %v726, 0.0
      %v949 = vmax.f32 %v728, 0.0
      %v950 = vmax.f32 %v732, 0.0
      %v951 = vmax.f32 %v734, 0.0
      %v952 = vmax.f32 %v736, 0.0
      %v953 = vmax.f32 %v738, 0.0
      %v954 = vmax.f32 %v742, 0.0
      %v955 = vmax.f32 %v744, 0.0
      %v956 = vmax.f32 %v746, 0.0
      %v957 = vmax.f32 %v748, 0.0
      %v958 = vmax.f32 %v752, 0.0
      %v959 = vmax.f32 %v754, 0.0
      %v960 = vmax.f32 %v756, 0.0
      %v961 = vmax.f32 %v758, 0.0
      %v962 = vmax.f32 %v762, 0.0
      %v963 = vmax.f32 %v764, 0.0
      %v964 = vmax.f32 %v766, 0.0
      %v965 = vmax.f32 %v768, 0.0
      %v966 = vmax.f32 %v772, 0.0
      %v967 = vmax.f32 %v774, 0.0
      %v968 = vmax.f32 %v776, 0.0
      %v969 = vmax.f32 %v778, 0.0
      %v970 = vmax.f32 %v782, 0.0
      %v971 = vmax.f32 %v784, 0.0
      %v972 = vmax.f32 %v786, 0.0
      %v973 = vmax.f32 %v788, 0.0
      %v974 = vmax.f32 %v792, 0.0
      %v975 = vmax.f32 %v794, 0.0
      %v976 = vmax.f32 %v796, 0.0
      %v977 = vmax.f32 %v798, 0.0
      %v978 = vmax.f32 %v802, 0.0
      %v979 = vmax.f32 %v804, 0.0
      %v980 = vmax.f32 %v806, 0.0
      %v981 = vmax.f32 %v808, 0.0
      %v982 = vmax.f32 %v812, 0.0
      %v983 = vmax.f32 %v814, 0.0
      %v984 = vmax.f32 %v816, 0.0
      %v985 = vmax.f32 %v818, 0.0
      %v986 = vmax.f32 %v822, 0.0
      %v987 = vmax.f32 %v824, 0.0
      %v988 = vmax.f32 %v826, 0.0
      %v989 = vmax.f32 %v828, 0.0
      %v990 = vmax.f32 %v832, 0.0
      %v991 = vmax.f32 %v834, 0.0
      %v992 = vmax.f32 %v836, 0.0
      %v993 = vmax.f32 %v838, 0.0
      %v994 = vmax.f32 %v842, 0.0
      %v995 = vmax.f32 %v844, 0.0
      %v996 = vmax.f32 %v846, 0.0
      %v997 = vmax.f32 %v848, 0.0
      %v998 = vmax.f32 %v852, 0.0
      %v999 = vmax.f32 %v854, 0.0
      %v1000 = vmax.f32 %v856, 0.0
      %v1001 = vmax.f32 %v858, 0.0
      %v1002 = vmax.f32 %v862, 0.0
      %v1003 = vmax.f32 %v864, 0.0
      %v1004 = vmax.f32 %v866, 0.0
      %v1005 = vmax.f32 %v868, 0.0
      %v1006 = vmax.f32 %v872, 0.0
      %v1007 = vmax.f32 %v874, 0.0
      %v1008 = vpack.c.bf16 %v880, %v878
      %v1009 = vpack.c.bf16 %v881, %v879
      %v1010 = vpack.c.bf16 %v884, %v882
      %v1011 = vpack.c.bf16 %v885, %v883
      %v1012 = vpack.c.bf16 %v888, %v886
      %v1013 = vpack.c.bf16 %v889, %v887
      %v1014 = vpack.c.bf16 %v892, %v890
      %v1015 = vpack.c.bf16 %v893, %v891
      %v1016 = vpack.c.bf16 %v896, %v894
      %v1017 = vpack.c.bf16 %v897, %v895
      %v1018 = vpack.c.bf16 %v900, %v898
      %v1019 = vpack.c.bf16 %v901, %v899
      %v1020 = vpack.c.bf16 %v904, %v902
      %v1021 = vpack.c.bf16 %v905, %v903
      %v1022 = vpack.c.bf16 %v908, %v906
      %v1023 = vpack.c.bf16 %v909, %v907
      %v1024 = vpack.c.bf16 %v912, %v910
      %v1025 = vpack.c.bf16 %v913, %v911
      %v1026 = vpack.c.bf16 %v916, %v914
      %v1027 = vpack.c.bf16 %v917, %v915
      %v1028 = vpack.c.bf16 %v920, %v918
      %v1029 = vpack.c.bf16 %v921, %v919
      %v1030 = vpack.c.bf16 %v924, %v922
      %v1031 = vpack.c.bf16 %v925, %v923
      %v1032 = vpack.c.bf16 %v928, %v926
      %v1033 = vpack.c.bf16 %v929, %v927
      %v1034 = vpack.c.bf16 %v932, %v930
      %v1035 = vpack.c.bf16 %v933, %v931
      %v1036 = vpack.c.bf16 %v936, %v934
      %v1037 = vpack.c.bf16 %v937, %v935
      %v1038 = vpack.c.bf16 %v940, %v938
      %v1039 = vpack.c.bf16 %v941, %v939
      %v1040 = vpack.c.bf16 %v944, %v942
      %v1041 = vpack.c.bf16 %v945, %v943
      %v1042 = vpack.c.bf16 %v948, %v946
      %v1043 = vpack.c.bf16 %v949, %v947
      %v1044 = vpack.c.bf16 %v952, %v950
      %v1045 = vpack.c.bf16 %v953, %v951
      %v1046 = vpack.c.bf16 %v956, %v954
      %v1047 = vpack.c.bf16 %v957, %v955
      %v1048 = vpack.c.bf16 %v960, %v958
      %v1049 = vpack.c.bf16 %v961, %v959
      %v1050 = vpack.c.bf16 %v964, %v962
      %v1051 = vpack.c.bf16 %v965, %v963
      %v1052 = vpack.c.bf16 %v968, %v966
      %v1053 = vpack.c.bf16 %v969, %v967
      %v1054 = vpack.c.bf16 %v972, %v970
      %v1055 = vpack.c.bf16 %v973, %v971
      %v1056 = vpack.c.bf16 %v976, %v974
      %v1057 = vpack.c.bf16 %v977, %v975
      %v1058 = vpack.c.bf16 %v980, %v978
      %v1059 = vpack.c.bf16 %v981, %v979
      %v1060 = vpack.c.bf16 %v984, %v982
      %v1061 = vpack.c.bf16 %v985, %v983
      %v1062 = vpack.c.bf16 %v988, %v986
      %v1063 = vpack.c.bf16 %v989, %v987
      %v1064 = vpack.c.bf16 %v992, %v990
      %v1065 = vpack.c.bf16 %v993, %v991
      %v1066 = vpack.c.bf16 %v996, %v994
      %v1067 = vpack.c.bf16 %v997, %v995
      %v1068 = vpack.c.bf16 %v1000, %v998
      %v1069 = vpack.c.bf16 %v1001, %v999
      %v1070 = vpack.c.bf16 %v1004, %v1002
      %v1071 = vpack.c.bf16 %v1005, %v1003
      %v1072 = vpack.c.bf16 %v1006, %v1006
      %v1073 = vpack.c.bf16 %v1007, %v1007
      %v1074 = vld [vmem:[%s3] sm:$0xff]
      %v1075 = vld [vmem:[%s3 + $0x8] sm:$0xff]
      %v1076 = vld [vmem:[%s3 + $0x10] sm:$0xff]
      %v1077 = vld [vmem:[%s3 + $0x18] sm:$0xff]
      %v1078 = vld [vmem:[%s3 + $0x20] sm:$0xff]
      %v1079 = vld [vmem:[%s3 + $0x28] sm:$0xff]
      %v1080 = vld [vmem:[%s3 + $0x30] sm:$0xff]
      %v1081 = vld [vmem:[%s3 + $0x38] sm:$0xff]
      %v1082 = vld [vmem:[%s3 + $0x40] sm:$0xff]
      %v1083 = vld [vmem:[%s3 + $0x48] sm:$0xff]
      %v1084 = vld [vmem:[%s3 + $0x50] sm:$0xff]
      %v1085 = vld [vmem:[%s3 + $0x58] sm:$0xff]
      %v1086 = vld [vmem:[%s3 + $0x60] sm:$0xff]
      %v1087 = vld [vmem:[%s3 + $0x68] sm:$0xff]
      %v1088 = vld [vmem:[%s3 + $0x70] sm:$0xff]
      %v1089 = vld [vmem:[%s3 + $0x78] sm:$0xff]
      %v1090 = vld [vmem:[%s3 + $0x80] sm:$0xff]
      %v1091 = vld [vmem:[%s3 + $0x88] sm:$0xff]
      %v1092 = vld [vmem:[%s3 + $0x90] sm:$0xff]
      %v1093 = vld [vmem:[%s3 + $0x98] sm:$0xff]
      %v1094 = vld [vmem:[%s3 + $0xa0] sm:$0xff]
      %v1095 = vld [vmem:[%s3 + $0xa8] sm:$0xff]
      %v1096 = vld [vmem:[%s3 + $0xb0] sm:$0xff]
      %v1097 = vld [vmem:[%s3 + $0xb8] sm:$0xff]
      %v1098 = vld [vmem:[%s3 + $0xc0] sm:$0xff]
      %v1099 = vld [vmem:[%s3 + $0xc8] sm:$0xff]
      %v1100 = vld [vmem:[%s3 + $0xd0] sm:$0xff]
      %v1101 = vld [vmem:[%s3 + $0xd8] sm:$0xff]
      %v1102 = vld [vmem:[%s3 + $0xe0] sm:$0xff]
      %v1103 = vld [vmem:[%s3 + $0xe8] sm:$0xff]
      %v1104 = vld [vmem:[%s3 + $0xf0] sm:$0xff]
      %v1105 = vld [vmem:[%s3 + $0xf8] sm:$0xff]
      %v1106 = vld [vmem:[%s4] sm:$0x3]
      %v1108 = vlaneseq
      %v1109 = vshrl.u32 %v1108, 7
      %v1110 = vsub.s32 0, %v1109
      %v1111 = vrot.slane %v1106, %v1110
      %v1112 = vlaneseq
      %v1113 = vshrl.u32 %v1112, 7
      %v1114 = vsub.s32 1, %v1113
      %v1115 = vrot.slane %v1106, %v1114
      %v1150 = vunpack.c.l.b16 %v1074
      %v1151 = vunpack.c.h.b16 %v1074
      %v1152 = vunpack.c.l.b16 %v1075
      %v1153 = vunpack.c.h.b16 %v1075
      %v1154 = vunpack.c.l.b16 %v1076
      %v1155 = vunpack.c.h.b16 %v1076
      %v1156 = vunpack.c.l.b16 %v1077
      %v1157 = vunpack.c.h.b16 %v1077
      %v1158 = vunpack.c.l.b16 %v1078
      %v1159 = vunpack.c.h.b16 %v1078
      %v1160 = vunpack.c.l.b16 %v1079
      %v1161 = vunpack.c.h.b16 %v1079
      %v1162 = vunpack.c.l.b16 %v1080
      %v1163 = vunpack.c.h.b16 %v1080
      %v1164 = vunpack.c.l.b16 %v1081
      %v1165 = vunpack.c.h.b16 %v1081
      %v1166 = vunpack.c.l.b16 %v1082
      %v1167 = vunpack.c.h.b16 %v1082
      %v1168 = vunpack.c.l.b16 %v1083
      %v1169 = vunpack.c.h.b16 %v1083
      %v1170 = vunpack.c.l.b16 %v1084
      %v1171 = vunpack.c.h.b16 %v1084
      %v1172 = vunpack.c.l.b16 %v1085
      %v1173 = vunpack.c.h.b16 %v1085
      %v1174 = vunpack.c.l.b16 %v1086
      %v1175 = vunpack.c.h.b16 %v1086
      %v1176 = vunpack.c.l.b16 %v1087
      %v1177 = vunpack.c.h.b16 %v1087
      %v1178 = vunpack.c.l.b16 %v1088
      %v1179 = vunpack.c.h.b16 %v1088
      %v1180 = vunpack.c.l.b16 %v1089
      %v1181 = vunpack.c.h.b16 %v1089
      %v1182 = vunpack.c.l.b16 %v1090
      %v1183 = vunpack.c.h.b16 %v1090
      %v1184 = vunpack.c.l.b16 %v1091
      %v1185 = vunpack.c.h.b16 %v1091
      %v1186 = vunpack.c.l.b16 %v1092
      %v1187 = vunpack.c.h.b16 %v1092
      %v1188 = vunpack.c.l.b16 %v1093
      %v1189 = vunpack.c.h.b16 %v1093
      %v1190 = vunpack.c.l.b16 %v1094
      %v1191 = vunpack.c.h.b16 %v1094
      %v1192 = vunpack.c.l.b16 %v1095
      %v1193 = vunpack.c.h.b16 %v1095
      %v1194 = vunpack.c.l.b16 %v1096
      %v1195 = vunpack.c.h.b16 %v1096
      %v1196 = vunpack.c.l.b16 %v1097
      %v1197 = vunpack.c.h.b16 %v1097
      %v1198 = vunpack.c.l.b16 %v1098
      %v1199 = vunpack.c.h.b16 %v1098
      %v1200 = vunpack.c.l.b16 %v1099
      %v1201 = vunpack.c.h.b16 %v1099
      %v1202 = vunpack.c.l.b16 %v1100
      %v1203 = vunpack.c.h.b16 %v1100
      %v1204 = vunpack.c.l.b16 %v1101
      %v1205 = vunpack.c.h.b16 %v1101
      %v1206 = vunpack.c.l.b16 %v1102
      %v1207 = vunpack.c.h.b16 %v1102
      %v1208 = vunpack.c.l.b16 %v1103
      %v1209 = vunpack.c.h.b16 %v1103
      %v1210 = vunpack.c.l.b16 %v1104
      %v1211 = vunpack.c.h.b16 %v1104
      %v1212 = vunpack.c.l.b16 %v1105
      %v1213 = vunpack.c.h.b16 %v1105
      %v1214 = vpack.c.b16 %v1152, %v1150
      %v1215 = vpack.c.b16 %v1153, %v1151
      %v1216 = vpack.c.b16 %v1156, %v1154
      %v1217 = vpack.c.b16 %v1157, %v1155
      %v1218 = vpack.c.b16 %v1160, %v1158
      %v1219 = vpack.c.b16 %v1161, %v1159
      %v1220 = vpack.c.b16 %v1164, %v1162
      %v1221 = vpack.c.b16 %v1165, %v1163
      %v1222 = vpack.c.b16 %v1168, %v1166
      %v1223 = vpack.c.b16 %v1169, %v1167
      %v1224 = vpack.c.b16 %v1172, %v1170
      %v1225 = vpack.c.b16 %v1173, %v1171
      %v1226 = vpack.c.b16 %v1176, %v1174
      %v1227 = vpack.c.b16 %v1177, %v1175
      %v1228 = vpack.c.b16 %v1180, %v1178
      %v1229 = vpack.c.b16 %v1181, %v1179
      %v1230 = vpack.c.b16 %v1184, %v1182
      %v1231 = vpack.c.b16 %v1185, %v1183
      %v1232 = vpack.c.b16 %v1188, %v1186
      %v1233 = vpack.c.b16 %v1189, %v1187
      %v1234 = vpack.c.b16 %v1192, %v1190
      %v1235 = vpack.c.b16 %v1193, %v1191
      %v1236 = vpack.c.b16 %v1196, %v1194
      %v1237 = vpack.c.b16 %v1197, %v1195
      %v1238 = vpack.c.b16 %v1200, %v1198
      %v1239 = vpack.c.b16 %v1201, %v1199
      %v1240 = vpack.c.b16 %v1204, %v1202
      %v1241 = vpack.c.b16 %v1205, %v1203
      %v1242 = vpack.c.b16 %v1208, %v1206
      %v1243 = vpack.c.b16 %v1209, %v1207
      %v1244 = vpack.c.b16 %v1212, %v1210
      %v1245 = vpack.c.b16 %v1213, %v1211
      %1278 = vmatprep.subr.bf16.mxu0 %v1215
      %1279 = vmatpush1.bf16.msra.mxu0 %v1214
      %1280 = vmatprep.subr.bf16.mxu0 %v1217
      %1281 = vmatpush1.bf16.msra.mxu0 %v1216
      %1282 = vmatprep.subr.bf16.mxu0 %v1219
      %1283 = vmatpush1.bf16.msra.mxu0 %v1218
      %1284 = vmatprep.subr.bf16.mxu0 %v1221
      %1285 = vmatpush1.bf16.msra.mxu0 %v1220
      %1286 = vmatprep.subr.bf16.mxu0 %v1223
      %1287 = vmatpush1.bf16.msra.mxu0 %v1222
      %1288 = vmatprep.subr.bf16.mxu0 %v1225
      %1289 = vmatpush1.bf16.msra.mxu0 %v1224
      %1290 = vmatprep.subr.bf16.mxu0 %v1227
      %1291 = vmatpush1.bf16.msra.mxu0 %v1226
      %1292 = vmatprep.subr.bf16.mxu0 %v1229
      %1293 = vmatpush1.bf16.msra.mxu0 %v1228
      %1294 = vmatprep.subr.bf16.mxu0 %v1231
      %1295 = vmatpush1.bf16.msra.mxu0 %v1230
      %1296 = vmatprep.subr.bf16.mxu0 %v1233
      %1297 = vmatpush1.bf16.msra.mxu0 %v1232
      %1298 = vmatprep.subr.bf16.mxu0 %v1235
      %1299 = vmatpush1.bf16.msra.mxu0 %v1234
      %1300 = vmatprep.subr.bf16.mxu0 %v1237
      %1301 = vmatpush1.bf16.msra.mxu0 %v1236
      %1302 = vmatprep.subr.bf16.mxu0 %v1239
      %1303 = vmatpush1.bf16.msra.mxu0 %v1238
      %1304 = vmatprep.subr.bf16.mxu0 %v1241
      %1305 = vmatpush1.bf16.msra.mxu0 %v1240
      %1306 = vmatprep.subr.bf16.mxu0 %v1243
      %1307 = vmatpush1.bf16.msra.mxu0 %v1242
      %1308 = vmatprep.subr.bf16.mxu0 %v1245
      %1309 = vmatpush1.bf16.msra.mxu0 %v1244
      %1310 = vmatprep.mubr.bf16.mxu0 %v1009
      %1311 = vmatmul.mubr.bf16.gmra.mrb[0].mxu0 %v1008
      %v1312 = vpop.f32.mrb[0].mxu0
      %v1313 = vadd.f32 %v1111, %v1312
      %v1314 = vpop.f32.mrb[0].mxu0
      %v1315 = vadd.f32 %v1115, %v1314
      %v1316 = vpop.f32.mrb[0].mxu0
      %v1317 = vadd.f32 %v1111, %v1316
      %v1318 = vpop.f32.mrb[0].mxu0
      %v1319 = vadd.f32 %v1115, %v1318
      %1320 = vmatprep.mubr.bf16.mxu0 %v1011
      %1321 = vmatmul.mubr.bf16.gmra.mrb[0].mxu0 %v1010
      %v1322 = vpop.f32.mrb[0].mxu0
      %v1323 = vadd.f32 %v1111, %v1322
      %v1324 = vpop.f32.mrb[0].mxu0
      %v1325 = vadd.f32 %v1115, %v1324
      %v1326 = vpop.f32.mrb[0].mxu0
      %v1327 = vadd.f32 %v1111, %v1326
      %v1328 = vpop.f32.mrb[0].mxu0
      %v1329 = vadd.f32 %v1115, %v1328
      %1330 = vmatprep.mubr.bf16.mxu0 %v1013
      %1331 = vmatmul.mubr.bf16.gmra.mrb[0].mxu0 %v1012
      %v1332 = vpop.f32.mrb[0].mxu0
      %v1333 = vadd.f32 %v1111, %v1332
      %v1334 = vpop.f32.mrb[0].mxu0
      %v1335 = vadd.f32 %v1115, %v1334
      %v1336 = vpop.f32.mrb[0].mxu0
      %v1337 = vadd.f32 %v1111, %v1336
      %v1338 = vpop.f32.mrb[0].mxu0
      %v1339 = vadd.f32 %v1115, %v1338
      %1340 = vmatprep.mubr.bf16.mxu0 %v1015
      %1341 = vmatmul.mubr.bf16.gmra.mrb[0].mxu0 %v1014
      %v1342 = vpop.f32.mrb[0].mxu0
      %v1343 = vadd.f32 %v1111, %v1342
      %v1344 = vpop.f32.mrb[0].mxu0
      %v1345 = vadd.f32 %v1115, %v1344
      %v1346 = vpop.f32.mrb[0].mxu0
      %v1347 = vadd.f32 %v1111, %v1346
      %v1348 = vpop.f32.mrb[0].mxu0
      %v1349 = vadd.f32 %v1115, %v1348
      %1350 = vmatprep.mubr.bf16.mxu0 %v1017
      %1351 = vmatmul.mubr.bf16.gmra.mrb[0].mxu0 %v1016
      %v1352 = vpop.f32.mrb[0].mxu0
      %v1353 = vadd.f32 %v1111, %v1352
      %v1354 = vpop.f32.mrb[0].mxu0
      %v1355 = vadd.f32 %v1115, %v1354
      %v1356 = vpop.f32.mrb[0].mxu0
      %v1357 = vadd.f32 %v1111, %v1356
      %v1358 = vpop.f32.mrb[0].mxu0
      %v1359 = vadd.f32 %v1115, %v1358
      %1360 = vmatprep.mubr.bf16.mxu0 %v1019
      %1361 = vmatmul.mubr.bf16.gmra.mrb[0].mxu0 %v1018
      %v1362 = vpop.f32.mrb[0].mxu0
      %v1363 = vadd.f32 %v1111, %v1362
      %v1364 = vpop.f32.mrb[0].mxu0
      %v1365 = vadd.f32 %v1115, %v1364
      %v1366 = vpop.f32.mrb[0].mxu0
      %v1367 = vadd.f32 %v1111, %v1366
      %v1368 = vpop.f32.mrb[0].mxu0
      %v1369 = vadd.f32 %v1115, %v1368
      %1370 = vmatprep.mubr.bf16.mxu0 %v1021
      %1371 = vmatmul.mubr.bf16.gmra.mrb[0].mxu0 %v1020
      %v1372 = vpop.f32.mrb[0].mxu0
      %v1373 = vadd.f32 %v1111, %v1372
      %v1374 = vpop.f32.mrb[0].mxu0
      %v1375 = vadd.f32 %v1115, %v1374
      %v1376 = vpop.f32.mrb[0].mxu0
      %v1377 = vadd.f32 %v1111, %v1376
      %v1378 = vpop.f32.mrb[0].mxu0
      %v1379 = vadd.f32 %v1115, %v1378
      %1380 = vmatprep.mubr.bf16.mxu0 %v1023
      %1381 = vmatmul.mubr.bf16.gmra.mrb[0].mxu0 %v1022
      %v1382 = vpop.f32.mrb[0].mxu0
      %v1383 = vadd.f32 %v1111, %v1382
      %v1384 = vpop.f32.mrb[0].mxu0
      %v1385 = vadd.f32 %v1115, %v1384
      %v1386 = vpop.f32.mrb[0].mxu0
      %v1387 = vadd.f32 %v1111, %v1386
      %v1388 = vpop.f32.mrb[0].mxu0
      %v1389 = vadd.f32 %v1115, %v1388
      %1390 = vmatprep.mubr.bf16.mxu0 %v1025
      %1391 = vmatmul.mubr.bf16.gmra.mrb[0].mxu0 %v1024
      %v1392 = vpop.f32.mrb[0].mxu0
      %v1393 = vadd.f32 %v1111, %v1392
      %v1394 = vpop.f32.mrb[0].mxu0
      %v1395 = vadd.f32 %v1115, %v1394
      %v1396 = vpop.f32.mrb[0].mxu0
      %v1397 = vadd.f32 %v1111, %v1396
      %v1398 = vpop.f32.mrb[0].mxu0
      %v1399 = vadd.f32 %v1115, %v1398
      %1400 = vmatprep.mubr.bf16.mxu0 %v1027
      %1401 = vmatmul.mubr.bf16.gmra.mrb[0].mxu0 %v1026
      %v1402 = vpop.f32.mrb[0].mxu0
      %v1403 = vadd.f32 %v1111, %v1402
      %v1404 = vpop.f32.mrb[0].mxu0
      %v1405 = vadd.f32 %v1115, %v1404
      %v1406 = vpop.f32.mrb[0].mxu0
      %v1407 = vadd.f32 %v1111, %v1406
      %v1408 = vpop.f32.mrb[0].mxu0
      %v1409 = vadd.f32 %v1115, %v1408
      %1410 = vmatprep.mubr.bf16.mxu0 %v1029
      %1411 = vmatmul.mubr.bf16.gmra.mrb[0].mxu0 %v1028
      %v1412 = vpop.f32.mrb[0].mxu0
      %v1413 = vadd.f32 %v1111, %v1412
      %v1414 = vpop.f32.mrb[0].mxu0
      %v1415 = vadd.f32 %v1115, %v1414
      %v1416 = vpop.f32.mrb[0].mxu0
      %v1417 = vadd.f32 %v1111, %v1416
      %v1418 = vpop.f32.mrb[0].mxu0
      %v1419 = vadd.f32 %v1115, %v1418
      %1420 = vmatprep.mubr.bf16.mxu0 %v1031
      %1421 = vmatmul.mubr.bf16.gmra.mrb[0].mxu0 %v1030
      %v1422 = vpop.f32.mrb[0].mxu0
      %v1423 = vadd.f32 %v1111, %v1422
      %v1424 = vpop.f32.mrb[0].mxu0
      %v1425 = vadd.f32 %v1115, %v1424
      %v1426 = vpop.f32.mrb[0].mxu0
      %v1427 = vadd.f32 %v1111, %v1426
      %v1428 = vpop.f32.mrb[0].mxu0
      %v1429 = vadd.f32 %v1115, %v1428
      %1430 = vmatprep.mubr.bf16.mxu0 %v1033
      %1431 = vmatmul.mubr.bf16.gmra.mrb[0].mxu0 %v1032
      %v1432 = vpop.f32.mrb[0].mxu0
      %v1433 = vadd.f32 %v1111, %v1432
      %v1434 = vpop.f32.mrb[0].mxu0
      %v1435 = vadd.f32 %v1115, %v1434
      %v1436 = vpop.f32.mrb[0].mxu0
      %v1437 = vadd.f32 %v1111, %v1436
      %v1438 = vpop.f32.mrb[0].mxu0
      %v1439 = vadd.f32 %v1115, %v1438
      %1440 = vmatprep.mubr.bf16.mxu0 %v1035
      %1441 = vmatmul.mubr.bf16.gmra.mrb[0].mxu0 %v1034
      %v1442 = vpop.f32.mrb[0].mxu0
      %v1443 = vadd.f32 %v1111, %v1442
      %v1444 = vpop.f32.mrb[0].mxu0
      %v1445 = vadd.f32 %v1115, %v1444
      %v1446 = vpop.f32.mrb[0].mxu0
      %v1447 = vadd.f32 %v1111, %v1446
      %v1448 = vpop.f32.mrb[0].mxu0
      %v1449 = vadd.f32 %v1115, %v1448
      %1450 = vmatprep.mubr.bf16.mxu0 %v1037
      %1451 = vmatmul.mubr.bf16.gmra.mrb[0].mxu0 %v1036
      %v1452 = vpop.f32.mrb[0].mxu0
      %v1453 = vadd.f32 %v1111, %v1452
      %v1454 = vpop.f32.mrb[0].mxu0
      %v1455 = vadd.f32 %v1115, %v1454
      %v1456 = vpop.f32.mrb[0].mxu0
      %v1457 = vadd.f32 %v1111, %v1456
      %v1458 = vpop.f32.mrb[0].mxu0
      %v1459 = vadd.f32 %v1115, %v1458
      %1460 = vmatprep.mubr.bf16.mxu0 %v1039
      %1461 = vmatmul.mubr.bf16.gmra.mrb[0].mxu0 %v1038
      %v1462 = vpop.f32.mrb[0].mxu0
      %v1463 = vadd.f32 %v1111, %v1462
      %v1464 = vpop.f32.mrb[0].mxu0
      %v1465 = vadd.f32 %v1115, %v1464
      %v1466 = vpop.f32.mrb[0].mxu0
      %v1467 = vadd.f32 %v1111, %v1466
      %v1468 = vpop.f32.mrb[0].mxu0
      %v1469 = vadd.f32 %v1115, %v1468
      %1470 = vmatprep.mubr.bf16.mxu0 %v1041
      %1471 = vmatmul.mubr.bf16.gmra.mrb[0].mxu0 %v1040
      %v1472 = vpop.f32.mrb[0].mxu0
      %v1473 = vadd.f32 %v1111, %v1472
      %v1474 = vpop.f32.mrb[0].mxu0
      %v1475 = vadd.f32 %v1115, %v1474
      %v1476 = vpop.f32.mrb[0].mxu0
      %v1477 = vadd.f32 %v1111, %v1476
      %v1478 = vpop.f32.mrb[0].mxu0
      %v1479 = vadd.f32 %v1115, %v1478
      %1480 = vmatprep.mubr.bf16.mxu0 %v1043
      %1481 = vmatmul.mubr.bf16.gmra.mrb[0].mxu0 %v1042
      %v1482 = vpop.f32.mrb[0].mxu0
      %v1483 = vadd.f32 %v1111, %v1482
      %v1484 = vpop.f32.mrb[0].mxu0
      %v1485 = vadd.f32 %v1115, %v1484
      %v1486 = vpop.f32.mrb[0].mxu0
      %v1487 = vadd.f32 %v1111, %v1486
      %v1488 = vpop.f32.mrb[0].mxu0
      %v1489 = vadd.f32 %v1115, %v1488
      %1490 = vmatprep.mubr.bf16.mxu0 %v1045
      %1491 = vmatmul.mubr.bf16.gmra.mrb[0].mxu0 %v1044
      %v1492 = vpop.f32.mrb[0].mxu0
      %v1493 = vadd.f32 %v1111, %v1492
      %v1494 = vpop.f32.mrb[0].mxu0
      %v1495 = vadd.f32 %v1115, %v1494
      %v1496 = vpop.f32.mrb[0].mxu0
      %v1497 = vadd.f32 %v1111, %v1496
      %v1498 = vpop.f32.mrb[0].mxu0
      %v1499 = vadd.f32 %v1115, %v1498
      %1500 = vmatprep.mubr.bf16.mxu0 %v1047
      %1501 = vmatmul.mubr.bf16.gmra.mrb[0].mxu0 %v1046
      %v1502 = vpop.f32.mrb[0].mxu0
      %v1503 = vadd.f32 %v1111, %v1502
      %v1504 = vpop.f32.mrb[0].mxu0
      %v1505 = vadd.f32 %v1115, %v1504
      %v1506 = vpop.f32.mrb[0].mxu0
      %v1507 = vadd.f32 %v1111, %v1506
      %v1508 = vpop.f32.mrb[0].mxu0
      %v1509 = vadd.f32 %v1115, %v1508
      %1510 = vmatprep.mubr.bf16.mxu0 %v1049
      %1511 = vmatmul.mubr.bf16.gmra.mrb[0].mxu0 %v1048
      %v1512 = vpop.f32.mrb[0].mxu0
      %v1513 = vadd.f32 %v1111, %v1512
      %v1514 = vpop.f32.mrb[0].mxu0
      %v1515 = vadd.f32 %v1115, %v1514
      %v1516 = vpop.f32.mrb[0].mxu0
      %v1517 = vadd.f32 %v1111, %v1516
      %v1518 = vpop.f32.mrb[0].mxu0
      %v1519 = vadd.f32 %v1115, %v1518
      %1520 = vmatprep.mubr.bf16.mxu0 %v1051
      %1521 = vmatmul.mubr.bf16.gmra.mrb[0].mxu0 %v1050
      %v1522 = vpop.f32.mrb[0].mxu0
      %v1523 = vadd.f32 %v1111, %v1522
      %v1524 = vpop.f32.mrb[0].mxu0
      %v1525 = vadd.f32 %v1115, %v1524
      %v1526 = vpop.f32.mrb[0].mxu0
      %v1527 = vadd.f32 %v1111, %v1526
      %v1528 = vpop.f32.mrb[0].mxu0
      %v1529 = vadd.f32 %v1115, %v1528
      %1530 = vmatprep.mubr.bf16.mxu0 %v1053
      %1531 = vmatmul.mubr.bf16.gmra.mrb[0].mxu0 %v1052
      %v1532 = vpop.f32.mrb[0].mxu0
      %v1533 = vadd.f32 %v1111, %v1532
      %v1534 = vpop.f32.mrb[0].mxu0
      %v1535 = vadd.f32 %v1115, %v1534
      %v1536 = vpop.f32.mrb[0].mxu0
      %v1537 = vadd.f32 %v1111, %v1536
      %v1538 = vpop.f32.mrb[0].mxu0
      %v1539 = vadd.f32 %v1115, %v1538
      %1540 = vmatprep.mubr.bf16.mxu0 %v1055
      %1541 = vmatmul.mubr.bf16.gmra.mrb[0].mxu0 %v1054
      %v1542 = vpop.f32.mrb[0].mxu0
      %v1543 = vadd.f32 %v1111, %v1542
      %v1544 = vpop.f32.mrb[0].mxu0
      %v1545 = vadd.f32 %v1115, %v1544
      %v1546 = vpop.f32.mrb[0].mxu0
      %v1547 = vadd.f32 %v1111, %v1546
      %v1548 = vpop.f32.mrb[0].mxu0
      %v1549 = vadd.f32 %v1115, %v1548
      %1550 = vmatprep.mubr.bf16.mxu0 %v1057
      %1551 = vmatmul.mubr.bf16.gmra.mrb[0].mxu0 %v1056
      %v1552 = vpop.f32.mrb[0].mxu0
      %v1553 = vadd.f32 %v1111, %v1552
      %v1554 = vpop.f32.mrb[0].mxu0
      %v1555 = vadd.f32 %v1115, %v1554
      %v1556 = vpop.f32.mrb[0].mxu0
      %v1557 = vadd.f32 %v1111, %v1556
      %v1558 = vpop.f32.mrb[0].mxu0
      %v1559 = vadd.f32 %v1115, %v1558
      %1560 = vmatprep.mubr.bf16.mxu0 %v1059
      %1561 = vmatmul.mubr.bf16.gmra.mrb[0].mxu0 %v1058
      %v1562 = vpop.f32.mrb[0].mxu0
      %v1563 = vadd.f32 %v1111, %v1562
      %v1564 = vpop.f32.mrb[0].mxu0
      %v1565 = vadd.f32 %v1115, %v1564
      %v1566 = vpop.f32.mrb[0].mxu0
      %v1567 = vadd.f32 %v1111, %v1566
      %v1568 = vpop.f32.mrb[0].mxu0
      %v1569 = vadd.f32 %v1115, %v1568
      %1570 = vmatprep.mubr.bf16.mxu0 %v1061
      %1571 = vmatmul.mubr.bf16.gmra.mrb[0].mxu0 %v1060
      %v1572 = vpop.f32.mrb[0].mxu0
      %v1573 = vadd.f32 %v1111, %v1572
      %v1574 = vpop.f32.mrb[0].mxu0
      %v1575 = vadd.f32 %v1115, %v1574
      %v1576 = vpop.f32.mrb[0].mxu0
      %v1577 = vadd.f32 %v1111, %v1576
      %v1578 = vpop.f32.mrb[0].mxu0
      %v1579 = vadd.f32 %v1115, %v1578
      %1580 = vmatprep.mubr.bf16.mxu0 %v1063
      %1581 = vmatmul.mubr.bf16.gmra.mrb[0].mxu0 %v1062
      %v1582 = vpop.f32.mrb[0].mxu0
      %v1583 = vadd.f32 %v1111, %v1582
      %v1584 = vpop.f32.mrb[0].mxu0
      %v1585 = vadd.f32 %v1115, %v1584
      %v1586 = vpop.f32.mrb[0].mxu0
      %v1587 = vadd.f32 %v1111, %v1586
      %v1588 = vpop.f32.mrb[0].mxu0
      %v1589 = vadd.f32 %v1115, %v1588
      %1590 = vmatprep.mubr.bf16.mxu0 %v1065
      %1591 = vmatmul.mubr.bf16.gmra.mrb[0].mxu0 %v1064
      %v1592 = vpop.f32.mrb[0].mxu0
      %v1593 = vadd.f32 %v1111, %v1592
      %v1594 = vpop.f32.mrb[0].mxu0
      %v1595 = vadd.f32 %v1115, %v1594
      %v1596 = vpop.f32.mrb[0].mxu0
      %v1597 = vadd.f32 %v1111, %v1596
      %v1598 = vpop.f32.mrb[0].mxu0
      %v1599 = vadd.f32 %v1115, %v1598
      %1600 = vmatprep.mubr.bf16.mxu0 %v1067
      %1601 = vmatmul.mubr.bf16.gmra.mrb[0].mxu0 %v1066
      %v1602 = vpop.f32.mrb[0].mxu0
      %v1603 = vadd.f32 %v1111, %v1602
      %v1604 = vpop.f32.mrb[0].mxu0
      %v1605 = vadd.f32 %v1115, %v1604
      %v1606 = vpop.f32.mrb[0].mxu0
      %v1607 = vadd.f32 %v1111, %v1606
      %v1608 = vpop.f32.mrb[0].mxu0
      %v1609 = vadd.f32 %v1115, %v1608
      %1610 = vmatprep.mubr.bf16.mxu0 %v1069
      %1611 = vmatmul.mubr.bf16.gmra.mrb[0].mxu0 %v1068
      %v1612 = vpop.f32.mrb[0].mxu0
      %v1613 = vadd.f32 %v1111, %v1612
      %v1614 = vpop.f32.mrb[0].mxu0
      %v1615 = vadd.f32 %v1115, %v1614
      %v1616 = vpop.f32.mrb[0].mxu0
      %v1617 = vadd.f32 %v1111, %v1616
      %v1618 = vpop.f32.mrb[0].mxu0
      %v1619 = vadd.f32 %v1115, %v1618
      %1620 = vmatprep.mubr.bf16.mxu0 %v1071
      %1621 = vmatmul.mubr.bf16.gmra.mrb[0].mxu0 %v1070
      %v1622 = vpop.f32.mrb[0].mxu0
      %v1623 = vadd.f32 %v1111, %v1622
      %v1624 = vpop.f32.mrb[0].mxu0
      %v1625 = vadd.f32 %v1115, %v1624
      %v1626 = vpop.f32.mrb[0].mxu0
      %v1627 = vadd.f32 %v1111, %v1626
      %v1628 = vpop.f32.mrb[0].mxu0
      %v1629 = vadd.f32 %v1115, %v1628
      %1630 = vmatprep.mubr.bf16.mxu0 %v1073
      %1631 = vmatmul.mubr.bf16.gmra.mrb[0].mxu0 %v1072
      %v1632 = vpop.f32.mrb[0].mxu0
      %v1633 = vadd.f32 %v1111, %v1632
      %v1634 = vpop.f32.mrb[0].mxu0
      %v1635 = vadd.f32 %v1115, %v1634
      %v1636 = vpop.f32.mrb[0].mxu0
      %v1637 = vpop.f32.mrb[0].mxu0
      %1638 = vdwg.mxu0
      %v1639 = vmax.f32 %v1313, 0.0
      %v1640 = vmax.f32 %v1315, 0.0
      %v1641 = vmax.f32 %v1317, 0.0
      %v1642 = vmax.f32 %v1319, 0.0
      %v1643 = vmax.f32 %v1323, 0.0
      %v1644 = vmax.f32 %v1325, 0.0
      %v1645 = vmax.f32 %v1327, 0.0
      %v1646 = vmax.f32 %v1329, 0.0
      %v1647 = vmax.f32 %v1333, 0.0
      %v1648 = vmax.f32 %v1335, 0.0
      %v1649 = vmax.f32 %v1337, 0.0
      %v1650 = vmax.f32 %v1339, 0.0
      %v1651 = vmax.f32 %v1343, 0.0
      %v1652 = vmax.f32 %v1345, 0.0
      %v1653 = vmax.f32 %v1347, 0.0
      %v1654 = vmax.f32 %v1349, 0.0
      %v1655 = vmax.f32 %v1353, 0.0
      %v1656 = vmax.f32 %v1355, 0.0
      %v1657 = vmax.f32 %v1357, 0.0
      %v1658 = vmax.f32 %v1359, 0.0
      %v1659 = vmax.f32 %v1363, 0.0
      %v1660 = vmax.f32 %v1365, 0.0
      %v1661 = vmax.f32 %v1367, 0.0
      %v1662 = vmax.f32 %v1369, 0.0
      %v1663 = vmax.f32 %v1373, 0.0
      %v1664 = vmax.f32 %v1375, 0.0
      %v1665 = vmax.f32 %v1377, 0.0
      %v1666 = vmax.f32 %v1379, 0.0
      %v1667 = vmax.f32 %v1383, 0.0
      %v1668 = vmax.f32 %v1385, 0.0
      %v1669 = vmax.f32 %v1387, 0.0
      %v1670 = vmax.f32 %v1389, 0.0
      %v1671 = vmax.f32 %v1393, 0.0
      %v1672 = vmax.f32 %v1395, 0.0
      %v1673 = vmax.f32 %v1397, 0.0
      %v1674 = vmax.f32 %v1399, 0.0
      %v1675 = vmax.f32 %v1403, 0.0
      %v1676 = vmax.f32 %v1405, 0.0
      %v1677 = vmax.f32 %v1407, 0.0
      %v1678 = vmax.f32 %v1409, 0.0
      %v1679 = vmax.f32 %v1413, 0.0
      %v1680 = vmax.f32 %v1415, 0.0
      %v1681 = vmax.f32 %v1417, 0.0
      %v1682 = vmax.f32 %v1419, 0.0
      %v1683 = vmax.f32 %v1423, 0.0
      %v1684 = vmax.f32 %v1425, 0.0
      %v1685 = vmax.f32 %v1427, 0.0
      %v1686 = vmax.f32 %v1429, 0.0
      %v1687 = vmax.f32 %v1433, 0.0
      %v1688 = vmax.f32 %v1435, 0.0
      %v1689 = vmax.f32 %v1437, 0.0
      %v1690 = vmax.f32 %v1439, 0.0
      %v1691 = vmax.f32 %v1443, 0.0
      %v1692 = vmax.f32 %v1445, 0.0
      %v1693 = vmax.f32 %v1447, 0.0
      %v1694 = vmax.f32 %v1449, 0.0
      %v1695 = vmax.f32 %v1453, 0.0
      %v1696 = vmax.f32 %v1455, 0.0
      %v1697 = vmax.f32 %v1457, 0.0
      %v1698 = vmax.f32 %v1459, 0.0
      %v1699 = vmax.f32 %v1463, 0.0
      %v1700 = vmax.f32 %v1465, 0.0
      %v1701 = vmax.f32 %v1467, 0.0
      %v1702 = vmax.f32 %v1469, 0.0
      %v1703 = vmax.f32 %v1473, 0.0
      %v1704 = vmax.f32 %v1475, 0.0
      %v1705 = vmax.f32 %v1477, 0.0
      %v1706 = vmax.f32 %v1479, 0.0
      %v1707 = vmax.f32 %v1483, 0.0
      %v1708 = vmax.f32 %v1485, 0.0
      %v1709 = vmax.f32 %v1487, 0.0
      %v1710 = vmax.f32 %v1489, 0.0
      %v1711 = vmax.f32 %v1493, 0.0
      %v1712 = vmax.f32 %v1495, 0.0
      %v1713 = vmax.f32 %v1497, 0.0
      %v1714 = vmax.f32 %v1499, 0.0
      %v1715 = vmax.f32 %v1503, 0.0
      %v1716 = vmax.f32 %v1505, 0.0
      %v1717 = vmax.f32 %v1507, 0.0
      %v1718 = vmax.f32 %v1509, 0.0
      %v1719 = vmax.f32 %v1513, 0.0
      %v1720 = vmax.f32 %v1515, 0.0
      %v1721 = vmax.f32 %v1517, 0.0
      %v1722 = vmax.f32 %v1519, 0.0
      %v1723 = vmax.f32 %v1523, 0.0
      %v1724 = vmax.f32 %v1525, 0.0
      %v1725 = vmax.f32 %v1527, 0.0
      %v1726 = vmax.f32 %v1529, 0.0
      %v1727 = vmax.f32 %v1533, 0.0
      %v1728 = vmax.f32 %v1535, 0.0
      %v1729 = vmax.f32 %v1537, 0.0
      %v1730 = vmax.f32 %v1539, 0.0
      %v1731 = vmax.f32 %v1543, 0.0
      %v1732 = vmax.f32 %v1545, 0.0
      %v1733 = vmax.f32 %v1547, 0.0
      %v1734 = vmax.f32 %v1549, 0.0
      %v1735 = vmax.f32 %v1553, 0.0
      %v1736 = vmax.f32 %v1555, 0.0
      %v1737 = vmax.f32 %v1557, 0.0
      %v1738 = vmax.f32 %v1559, 0.0
      %v1739 = vmax.f32 %v1563, 0.0
      %v1740 = vmax.f32 %v1565, 0.0
      %v1741 = vmax.f32 %v1567, 0.0
      %v1742 = vmax.f32 %v1569, 0.0
      %v1743 = vmax.f32 %v1573, 0.0
      %v1744 = vmax.f32 %v1575, 0.0
      %v1745 = vmax.f32 %v1577, 0.0
      %v1746 = vmax.f32 %v1579, 0.0
      %v1747 = vmax.f32 %v1583, 0.0
      %v1748 = vmax.f32 %v1585, 0.0
      %v1749 = vmax.f32 %v1587, 0.0
      %v1750 = vmax.f32 %v1589, 0.0
      %v1751 = vmax.f32 %v1593, 0.0
      %v1752 = vmax.f32 %v1595, 0.0
      %v1753 = vmax.f32 %v1597, 0.0
      %v1754 = vmax.f32 %v1599, 0.0
      %v1755 = vmax.f32 %v1603, 0.0
      %v1756 = vmax.f32 %v1605, 0.0
      %v1757 = vmax.f32 %v1607, 0.0
      %v1758 = vmax.f32 %v1609, 0.0
      %v1759 = vmax.f32 %v1613, 0.0
      %v1760 = vmax.f32 %v1615, 0.0
      %v1761 = vmax.f32 %v1617, 0.0
      %v1762 = vmax.f32 %v1619, 0.0
      %v1763 = vmax.f32 %v1623, 0.0
      %v1764 = vmax.f32 %v1625, 0.0
      %v1765 = vmax.f32 %v1627, 0.0
      %v1766 = vmax.f32 %v1629, 0.0
      %v1767 = vmax.f32 %v1633, 0.0
      %v1768 = vmax.f32 %v1635, 0.0
      %v1769 = vpack.c.bf16 %v1641, %v1639
      %v1770 = vpack.c.bf16 %v1642, %v1640
      %v1771 = vpack.c.bf16 %v1645, %v1643
      %v1772 = vpack.c.bf16 %v1646, %v1644
      %v1773 = vpack.c.bf16 %v1649, %v1647
      %v1774 = vpack.c.bf16 %v1650, %v1648
      %v1775 = vpack.c.bf16 %v1653, %v1651
      %v1776 = vpack.c.bf16 %v1654, %v1652
      %v1777 = vpack.c.bf16 %v1657, %v1655
      %v1778 = vpack.c.bf16 %v1658, %v1656
      %v1779 = vpack.c.bf16 %v1661, %v1659
      %v1780 = vpack.c.bf16 %v1662, %v1660
      %v1781 = vpack.c.bf16 %v1665, %v1663
      %v1782 = vpack.c.bf16 %v1666, %v1664
      %v1783 = vpack.c.bf16 %v1669, %v1667
      %v1784 = vpack.c.bf16 %v1670, %v1668
      %v1785 = vpack.c.bf16 %v1673, %v1671
      %v1786 = vpack.c.bf16 %v1674, %v1672
      %v1787 = vpack.c.bf16 %v1677, %v1675
      %v1788 = vpack.c.bf16 %v1678, %v1676
      %v1789 = vpack.c.bf16 %v1681, %v1679
      %v1790 = vpack.c.bf16 %v1682, %v1680
      %v1791 = vpack.c.bf16 %v1685, %v1683
      %v1792 = vpack.c.bf16 %v1686, %v1684
      %v1793 = vpack.c.bf16 %v1689, %v1687
      %v1794 = vpack.c.bf16 %v1690, %v1688
      %v1795 = vpack.c.bf16 %v1693, %v1691
      %v1796 = vpack.c.bf16 %v1694, %v1692
      %v1797 = vpack.c.bf16 %v1697, %v1695
      %v1798 = vpack.c.bf16 %v1698, %v1696
      %v1799 = vpack.c.bf16 %v1701, %v1699
      %v1800 = vpack.c.bf16 %v1702, %v1700
      %v1801 = vpack.c.bf16 %v1705, %v1703
      %v1802 = vpack.c.bf16 %v1706, %v1704
      %v1803 = vpack.c.bf16 %v1709, %v1707
      %v1804 = vpack.c.bf16 %v1710, %v1708
      %v1805 = vpack.c.bf16 %v1713, %v1711
      %v1806 = vpack.c.bf16 %v1714, %v1712
      %v1807 = vpack.c.bf16 %v1717, %v1715
      %v1808 = vpack.c.bf16 %v1718, %v1716
      %v1809 = vpack.c.bf16 %v1721, %v1719
      %v1810 = vpack.c.bf16 %v1722, %v1720
      %v1811 = vpack.c.bf16 %v1725, %v1723
      %v1812 = vpack.c.bf16 %v1726, %v1724
      %v1813 = vpack.c.bf16 %v1729, %v1727
      %v1814 = vpack.c.bf16 %v1730, %v1728
      %v1815 = vpack.c.bf16 %v1733, %v1731
      %v1816 = vpack.c.bf16 %v1734, %v1732
      %v1817 = vpack.c.bf16 %v1737, %v1735
      %v1818 = vpack.c.bf16 %v1738, %v1736
      %v1819 = vpack.c.bf16 %v1741, %v1739
      %v1820 = vpack.c.bf16 %v1742, %v1740
      %v1821 = vpack.c.bf16 %v1745, %v1743
      %v1822 = vpack.c.bf16 %v1746, %v1744
      %v1823 = vpack.c.bf16 %v1749, %v1747
      %v1824 = vpack.c.bf16 %v1750, %v1748
      %v1825 = vpack.c.bf16 %v1753, %v1751
      %v1826 = vpack.c.bf16 %v1754, %v1752
      %v1827 = vpack.c.bf16 %v1757, %v1755
      %v1828 = vpack.c.bf16 %v1758, %v1756
      %v1829 = vpack.c.bf16 %v1761, %v1759
      %v1830 = vpack.c.bf16 %v1762, %v1760
      %v1831 = vpack.c.bf16 %v1765, %v1763
      %v1832 = vpack.c.bf16 %v1766, %v1764
      %v1833 = vpack.c.bf16 %v1767, %v1767
      %v1834 = vpack.c.bf16 %v1768, %v1768
      %v1835 = vld [vmem:[%s5] sm:$0xf]
      %v1836 = vld [vmem:[%s5 + $0x4] sm:$0xf]
      %v1837 = vld [vmem:[%s5 + $0x8] sm:$0xf]
      %v1838 = vld [vmem:[%s5 + $0xc] sm:$0xf]
      %v1839 = vld [vmem:[%s5 + $0x10] sm:$0xf]
      %v1840 = vld [vmem:[%s5 + $0x14] sm:$0xf]
      %v1841 = vld [vmem:[%s5 + $0x18] sm:$0xf]
      %v1842 = vld [vmem:[%s5 + $0x1c] sm:$0xf]
      %v1843 = vld [vmem:[%s5 + $0x20] sm:$0xf]
      %v1844 = vld [vmem:[%s5 + $0x24] sm:$0xf]
      %v1845 = vld [vmem:[%s5 + $0x28] sm:$0xf]
      %v1846 = vld [vmem:[%s5 + $0x2c] sm:$0xf]
      %v1847 = vld [vmem:[%s5 + $0x30] sm:$0xf]
      %v1848 = vld [vmem:[%s5 + $0x34] sm:$0xf]
      %v1849 = vld [vmem:[%s5 + $0x38] sm:$0xf]
      %v1850 = vld [vmem:[%s5 + $0x3c] sm:$0xf]
      %v1851 = vld [vmem:[%s5 + $0x40] sm:$0xf]
      %v1852 = vld [vmem:[%s5 + $0x44] sm:$0xf]
      %v1853 = vld [vmem:[%s5 + $0x48] sm:$0xf]
      %v1854 = vld [vmem:[%s5 + $0x4c] sm:$0xf]
      %v1855 = vld [vmem:[%s5 + $0x50] sm:$0xf]
      %v1856 = vld [vmem:[%s5 + $0x54] sm:$0xf]
      %v1857 = vld [vmem:[%s5 + $0x58] sm:$0xf]
      %v1858 = vld [vmem:[%s5 + $0x5c] sm:$0xf]
      %v1859 = vld [vmem:[%s5 + $0x60] sm:$0xf]
      %v1860 = vld [vmem:[%s5 + $0x64] sm:$0xf]
      %v1861 = vld [vmem:[%s5 + $0x68] sm:$0xf]
      %v1862 = vld [vmem:[%s5 + $0x6c] sm:$0xf]
      %v1863 = vld [vmem:[%s5 + $0x70] sm:$0xf]
      %v1864 = vld [vmem:[%s5 + $0x74] sm:$0xf]
      %v1865 = vld [vmem:[%s5 + $0x78] sm:$0xf]
      %v1866 = vld [vmem:[%s5 + $0x7c] sm:$0xf]
      %v1867 = vld [vmem:[%s6] sm:$0x1]
      %v1869 = vlaneseq
      %v1870 = vshrl.u32 %v1869, 7
      %v1871 = vsub.s32 0, %v1870
      %v1872 = vrot.slane %v1867, %v1871
      %v1906 = vunpack.c.l.b16 %v1835
      %v1907 = vunpack.c.l.b16 %v1836
      %v1908 = vunpack.c.l.b16 %v1837
      %v1909 = vunpack.c.l.b16 %v1838
      %v1910 = vunpack.c.l.b16 %v1839
      %v1911 = vunpack.c.l.b16 %v1840
      %v1912 = vunpack.c.l.b16 %v1841
      %v1913 = vunpack.c.l.b16 %v1842
      %v1914 = vunpack.c.l.b16 %v1843
      %v1915 = vunpack.c.l.b16 %v1844
      %v1916 = vunpack.c.l.b16 %v1845
      %v1917 = vunpack.c.l.b16 %v1846
      %v1918 = vunpack.c.l.b16 %v1847
      %v1919 = vunpack.c.l.b16 %v1848
      %v1920 = vunpack.c.l.b16 %v1849
      %v1921 = vunpack.c.l.b16 %v1850
      %v1922 = vunpack.c.l.b16 %v1851
      %v1923 = vunpack.c.l.b16 %v1852
      %v1924 = vunpack.c.l.b16 %v1853
      %v1925 = vunpack.c.l.b16 %v1854
      %v1926 = vunpack.c.l.b16 %v1855
      %v1927 = vunpack.c.l.b16 %v1856
      %v1928 = vunpack.c.l.b16 %v1857
      %v1929 = vunpack.c.l.b16 %v1858
      %v1930 = vunpack.c.l.b16 %v1859
      %v1931 = vunpack.c.l.b16 %v1860
      %v1932 = vunpack.c.l.b16 %v1861
      %v1933 = vunpack.c.l.b16 %v1862
      %v1934 = vunpack.c.l.b16 %v1863
      %v1935 = vunpack.c.l.b16 %v1864
      %v1936 = vunpack.c.l.b16 %v1865
      %v1937 = vunpack.c.l.b16 %v1866
      %v1938 = vpack.c.b16 %v1907, %v1906
      %v1939 = vpack.c.b16 %v1909, %v1908
      %v1940 = vpack.c.b16 %v1911, %v1910
      %v1941 = vpack.c.b16 %v1913, %v1912
      %v1942 = vpack.c.b16 %v1915, %v1914
      %v1943 = vpack.c.b16 %v1917, %v1916
      %v1944 = vpack.c.b16 %v1919, %v1918
      %v1945 = vpack.c.b16 %v1921, %v1920
      %v1946 = vpack.c.b16 %v1923, %v1922
      %v1947 = vpack.c.b16 %v1925, %v1924
      %v1948 = vpack.c.b16 %v1927, %v1926
      %v1949 = vpack.c.b16 %v1929, %v1928
      %v1950 = vpack.c.b16 %v1931, %v1930
      %v1951 = vpack.c.b16 %v1933, %v1932
      %v1952 = vpack.c.b16 %v1935, %v1934
      %v1953 = vpack.c.b16 %v1937, %v1936
      %1970 = vmatprep.subr.bf16.mxu0 0
      %1971 = vmatpush1.bf16.msra.mxu0 %v1938
      %1972 = vmatprep.subr.bf16.mxu0 0
      %1973 = vmatpush1.bf16.msra.mxu0 %v1939
      %1974 = vmatprep.subr.bf16.mxu0 0
      %1975 = vmatpush1.bf16.msra.mxu0 %v1940
      %1976 = vmatprep.subr.bf16.mxu0 0
      %1977 = vmatpush1.bf16.msra.mxu0 %v1941
      %1978 = vmatprep.subr.bf16.mxu0 0
      %1979 = vmatpush1.bf16.msra.mxu0 %v1942
      %1980 = vmatprep.subr.bf16.mxu0 0
      %1981 = vmatpush1.bf16.msra.mxu0 %v1943
      %1982 = vmatprep.subr.bf16.mxu0 0
      %1983 = vmatpush1.bf16.msra.mxu0 %v1944
      %1984 = vmatprep.subr.bf16.mxu0 0
      %1985 = vmatpush1.bf16.msra.mxu0 %v1945
      %1986 = vmatprep.subr.bf16.mxu0 0
      %1987 = vmatpush1.bf16.msra.mxu0 %v1946
      %1988 = vmatprep.subr.bf16.mxu0 0
      %1989 = vmatpush1.bf16.msra.mxu0 %v1947
      %1990 = vmatprep.subr.bf16.mxu0 0
      %1991 = vmatpush1.bf16.msra.mxu0 %v1948
      %1992 = vmatprep.subr.bf16.mxu0 0
      %1993 = vmatpush1.bf16.msra.mxu0 %v1949
      %1994 = vmatprep.subr.bf16.mxu0 0
      %1995 = vmatpush1.bf16.msra.mxu0 %v1950
      %1996 = vmatprep.subr.bf16.mxu0 0
      %1997 = vmatpush1.bf16.msra.mxu0 %v1951
      %1998 = vmatprep.subr.bf16.mxu0 0
      %1999 = vmatpush1.bf16.msra.mxu0 %v1952
      %2000 = vmatprep.subr.bf16.mxu0 0
      %2001 = vmatpush1.bf16.msra.mxu0 %v1953
      %2002 = vmatprep.mubr.bf16.mxu0 %v1770
      %2003 = vmatmul.mubr.bf16.gmra.mrb[0].mxu0 %v1769
      %v2004 = vpop.f32.mrb[0].mxu0
      %v2005 = vadd.f32 %v1872, %v2004
      %v2006 = vpop.f32.mrb[0].mxu0
      %v2007 = vpop.f32.mrb[0].mxu0
      %v2008 = vadd.f32 %v1872, %v2007
      %v2009 = vpop.f32.mrb[0].mxu0
      %2010 = vmatprep.mubr.bf16.mxu0 %v1772
      %2011 = vmatmul.mubr.bf16.gmra.mrb[0].mxu0 %v1771
      %v2012 = vpop.f32.mrb[0].mxu0
      %v2013 = vadd.f32 %v1872, %v2012
      %v2014 = vpop.f32.mrb[0].mxu0
      %v2015 = vpop.f32.mrb[0].mxu0
      %v2016 = vadd.f32 %v1872, %v2015
      %v2017 = vpop.f32.mrb[0].mxu0
      %2018 = vmatprep.mubr.bf16.mxu0 %v1774
      %2019 = vmatmul.mubr.bf16.gmra.mrb[0].mxu0 %v1773
      %v2020 = vpop.f32.mrb[0].mxu0
      %v2021 = vadd.f32 %v1872, %v2020
      %v2022 = vpop.f32.mrb[0].mxu0
      %v2023 = vpop.f32.mrb[0].mxu0
      %v2024 = vadd.f32 %v1872, %v2023
      %v2025 = vpop.f32.mrb[0].mxu0
      %2026 = vmatprep.mubr.bf16.mxu0 %v1776
      %2027 = vmatmul.mubr.bf16.gmra.mrb[0].mxu0 %v1775
      %v2028 = vpop.f32.mrb[0].mxu0
      %v2029 = vadd.f32 %v1872, %v2028
      %v2030 = vpop.f32.mrb[0].mxu0
      %v2031 = vpop.f32.mrb[0].mxu0
      %v2032 = vadd.f32 %v1872, %v2031
      %v2033 = vpop.f32.mrb[0].mxu0
      %2034 = vmatprep.mubr.bf16.mxu0 %v1778
      %2035 = vmatmul.mubr.bf16.gmra.mrb[0].mxu0 %v1777
      %v2036 = vpop.f32.mrb[0].mxu0
      %v2037 = vadd.f32 %v1872, %v2036
      %v2038 = vpop.f32.mrb[0].mxu0
      %v2039 = vpop.f32.mrb[0].mxu0
      %v2040 = vadd.f32 %v1872, %v2039
      %v2041 = vpop.f32.mrb[0].mxu0
      %2042 = vmatprep.mubr.bf16.mxu0 %v1780
      %2043 = vmatmul.mubr.bf16.gmra.mrb[0].mxu0 %v1779
      %v2044 = vpop.f32.mrb[0].mxu0
      %v2045 = vadd.f32 %v1872, %v2044
      %v2046 = vpop.f32.mrb[0].mxu0
      %v2047 = vpop.f32.mrb[0].mxu0
      %v2048 = vadd.f32 %v1872, %v2047
      %v2049 = vpop.f32.mrb[0].mxu0
      %2050 = vmatprep.mubr.bf16.mxu0 %v1782
      %2051 = vmatmul.mubr.bf16.gmra.mrb[0].mxu0 %v1781
      %v2052 = vpop.f32.mrb[0].mxu0
      %v2053 = vadd.f32 %v1872, %v2052
      %v2054 = vpop.f32.mrb[0].mxu0
      %v2055 = vpop.f32.mrb[0].mxu0
      %v2056 = vadd.f32 %v1872, %v2055
      %v2057 = vpop.f32.mrb[0].mxu0
      %2058 = vmatprep.mubr.bf16.mxu0 %v1784
      %2059 = vmatmul.mubr.bf16.gmra.mrb[0].mxu0 %v1783
      %v2060 = vpop.f32.mrb[0].mxu0
      %v2061 = vadd.f32 %v1872, %v2060
      %v2062 = vpop.f32.mrb[0].mxu0
      %v2063 = vpop.f32.mrb[0].mxu0
      %v2064 = vadd.f32 %v1872, %v2063
      %v2065 = vpop.f32.mrb[0].mxu0
      %2066 = vmatprep.mubr.bf16.mxu0 %v1786
      %2067 = vmatmul.mubr.bf16.gmra.mrb[0].mxu0 %v1785
      %v2068 = vpop.f32.mrb[0].mxu0
      %v2069 = vadd.f32 %v1872, %v2068
      %v2070 = vpop.f32.mrb[0].mxu0
      %v2071 = vpop.f32.mrb[0].mxu0
      %v2072 = vadd.f32 %v1872, %v2071
      %v2073 = vpop.f32.mrb[0].mxu0
      %2074 = vmatprep.mubr.bf16.mxu0 %v1788
      %2075 = vmatmul.mubr.bf16.gmra.mrb[0].mxu0 %v1787
      %v2076 = vpop.f32.mrb[0].mxu0
      %v2077 = vadd.f32 %v1872, %v2076
      %v2078 = vpop.f32.mrb[0].mxu0
      %v2079 = vpop.f32.mrb[0].mxu0
      %v2080 = vadd.f32 %v1872, %v2079
      %v2081 = vpop.f32.mrb[0].mxu0
      %2082 = vmatprep.mubr.bf16.mxu0 %v1790
      %2083 = vmatmul.mubr.bf16.gmra.mrb[0].mxu0 %v1789
      %v2084 = vpop.f32.mrb[0].mxu0
      %v2085 = vadd.f32 %v1872, %v2084
      %v2086 = vpop.f32.mrb[0].mxu0
      %v2087 = vpop.f32.mrb[0].mxu0
      %v2088 = vadd.f32 %v1872, %v2087
      %v2089 = vpop.f32.mrb[0].mxu0
      %2090 = vmatprep.mubr.bf16.mxu0 %v1792
      %2091 = vmatmul.mubr.bf16.gmra.mrb[0].mxu0 %v1791
      %v2092 = vpop.f32.mrb[0].mxu0
      %v2093 = vadd.f32 %v1872, %v2092
      %v2094 = vpop.f32.mrb[0].mxu0
      %v2095 = vpop.f32.mrb[0].mxu0
      %v2096 = vadd.f32 %v1872, %v2095
      %v2097 = vpop.f32.mrb[0].mxu0
      %2098 = vmatprep.mubr.bf16.mxu0 %v1794
      %2099 = vmatmul.mubr.bf16.gmra.mrb[0].mxu0 %v1793
      %v2100 = vpop.f32.mrb[0].mxu0
      %v2101 = vadd.f32 %v1872, %v2100
      %v2102 = vpop.f32.mrb[0].mxu0
      %v2103 = vpop.f32.mrb[0].mxu0
      %v2104 = vadd.f32 %v1872, %v2103
      %v2105 = vpop.f32.mrb[0].mxu0
      %2106 = vmatprep.mubr.bf16.mxu0 %v1796
      %2107 = vmatmul.mubr.bf16.gmra.mrb[0].mxu0 %v1795
      %v2108 = vpop.f32.mrb[0].mxu0
      %v2109 = vadd.f32 %v1872, %v2108
      %v2110 = vpop.f32.mrb[0].mxu0
      %v2111 = vpop.f32.mrb[0].mxu0
      %v2112 = vadd.f32 %v1872, %v2111
      %v2113 = vpop.f32.mrb[0].mxu0
      %2114 = vmatprep.mubr.bf16.mxu0 %v1798
      %2115 = vmatmul.mubr.bf16.gmra.mrb[0].mxu0 %v1797
      %v2116 = vpop.f32.mrb[0].mxu0
      %v2117 = vadd.f32 %v1872, %v2116
      %v2118 = vpop.f32.mrb[0].mxu0
      %v2119 = vpop.f32.mrb[0].mxu0
      %v2120 = vadd.f32 %v1872, %v2119
      %v2121 = vpop.f32.mrb[0].mxu0
      %2122 = vmatprep.mubr.bf16.mxu0 %v1800
      %2123 = vmatmul.mubr.bf16.gmra.mrb[0].mxu0 %v1799
      %v2124 = vpop.f32.mrb[0].mxu0
      %v2125 = vadd.f32 %v1872, %v2124
      %v2126 = vpop.f32.mrb[0].mxu0
      %v2127 = vpop.f32.mrb[0].mxu0
      %v2128 = vadd.f32 %v1872, %v2127
      %v2129 = vpop.f32.mrb[0].mxu0
      %2130 = vmatprep.mubr.bf16.mxu0 %v1802
      %2131 = vmatmul.mubr.bf16.gmra.mrb[0].mxu0 %v1801
      %v2132 = vpop.f32.mrb[0].mxu0
      %v2133 = vadd.f32 %v1872, %v2132
      %v2134 = vpop.f32.mrb[0].mxu0
      %v2135 = vpop.f32.mrb[0].mxu0
      %v2136 = vadd.f32 %v1872, %v2135
      %v2137 = vpop.f32.mrb[0].mxu0
      %2138 = vmatprep.mubr.bf16.mxu0 %v1804
      %2139 = vmatmul.mubr.bf16.gmra.mrb[0].mxu0 %v1803
      %v2140 = vpop.f32.mrb[0].mxu0
      %v2141 = vadd.f32 %v1872, %v2140
      %v2142 = vpop.f32.mrb[0].mxu0
      %v2143 = vpop.f32.mrb[0].mxu0
      %v2144 = vadd.f32 %v1872, %v2143
      %v2145 = vpop.f32.mrb[0].mxu0
      %2146 = vmatprep.mubr.bf16.mxu0 %v1806
      %2147 = vmatmul.mubr.bf16.gmra.mrb[0].mxu0 %v1805
      %v2148 = vpop.f32.mrb[0].mxu0
      %v2149 = vadd.f32 %v1872, %v2148
      %v2150 = vpop.f32.mrb[0].mxu0
      %v2151 = vpop.f32.mrb[0].mxu0
      %v2152 = vadd.f32 %v1872, %v2151
      %v2153 = vpop.f32.mrb[0].mxu0
      %2154 = vmatprep.mubr.bf16.mxu0 %v1808
      %2155 = vmatmul.mubr.bf16.gmra.mrb[0].mxu0 %v1807
      %v2156 = vpop.f32.mrb[0].mxu0
      %v2157 = vadd.f32 %v1872, %v2156
      %v2158 = vpop.f32.mrb[0].mxu0
      %v2159 = vpop.f32.mrb[0].mxu0
      %v2160 = vadd.f32 %v1872, %v2159
      %v2161 = vpop.f32.mrb[0].mxu0
      %2162 = vmatprep.mubr.bf16.mxu0 %v1810
      %2163 = vmatmul.mubr.bf16.gmra.mrb[0].mxu0 %v1809
      %v2164 = vpop.f32.mrb[0].mxu0
      %v2165 = vadd.f32 %v1872, %v2164
      %v2166 = vpop.f32.mrb[0].mxu0
      %v2167 = vpop.f32.mrb[0].mxu0
      %v2168 = vadd.f32 %v1872, %v2167
      %v2169 = vpop.f32.mrb[0].mxu0
      %2170 = vmatprep.mubr.bf16.mxu0 %v1812
      %2171 = vmatmul.mubr.bf16.gmra.mrb[0].mxu0 %v1811
      %v2172 = vpop.f32.mrb[0].mxu0
      %v2173 = vadd.f32 %v1872, %v2172
      %v2174 = vpop.f32.mrb[0].mxu0
      %v2175 = vpop.f32.mrb[0].mxu0
      %v2176 = vadd.f32 %v1872, %v2175
      %v2177 = vpop.f32.mrb[0].mxu0
      %2178 = vmatprep.mubr.bf16.mxu0 %v1814
      %2179 = vmatmul.mubr.bf16.gmra.mrb[0].mxu0 %v1813
      %v2180 = vpop.f32.mrb[0].mxu0
      %v2181 = vadd.f32 %v1872, %v2180
      %v2182 = vpop.f32.mrb[0].mxu0
      %v2183 = vpop.f32.mrb[0].mxu0
      %v2184 = vadd.f32 %v1872, %v2183
      %v2185 = vpop.f32.mrb[0].mxu0
      %2186 = vmatprep.mubr.bf16.mxu0 %v1816
      %2187 = vmatmul.mubr.bf16.gmra.mrb[0].mxu0 %v1815
      %v2188 = vpop.f32.mrb[0].mxu0
      %v2189 = vadd.f32 %v1872, %v2188
      %v2190 = vpop.f32.mrb[0].mxu0
      %v2191 = vpop.f32.mrb[0].mxu0
      %v2192 = vadd.f32 %v1872, %v2191
      %v2193 = vpop.f32.mrb[0].mxu0
      %2194 = vmatprep.mubr.bf16.mxu0 %v1818
      %2195 = vmatmul.mubr.bf16.gmra.mrb[0].mxu0 %v1817
      %v2196 = vpop.f32.mrb[0].mxu0
      %v2197 = vadd.f32 %v1872, %v2196
      %v2198 = vpop.f32.mrb[0].mxu0
      %v2199 = vpop.f32.mrb[0].mxu0
      %v2200 = vadd.f32 %v1872, %v2199
      %v2201 = vpop.f32.mrb[0].mxu0
      %2202 = vmatprep.mubr.bf16.mxu0 %v1820
      %2203 = vmatmul.mubr.bf16.gmra.mrb[0].mxu0 %v1819
      %v2204 = vpop.f32.mrb[0].mxu0
      %v2205 = vadd.f32 %v1872, %v2204
      %v2206 = vpop.f32.mrb[0].mxu0
      %v2207 = vpop.f32.mrb[0].mxu0
      %v2208 = vadd.f32 %v1872, %v2207
      %v2209 = vpop.f32.mrb[0].mxu0
      %2210 = vmatprep.mubr.bf16.mxu0 %v1822
      %2211 = vmatmul.mubr.bf16.gmra.mrb[0].mxu0 %v1821
      %v2212 = vpop.f32.mrb[0].mxu0
      %v2213 = vadd.f32 %v1872, %v2212
      %v2214 = vpop.f32.mrb[0].mxu0
      %v2215 = vpop.f32.mrb[0].mxu0
      %v2216 = vadd.f32 %v1872, %v2215
      %v2217 = vpop.f32.mrb[0].mxu0
      %2218 = vmatprep.mubr.bf16.mxu0 %v1824
      %2219 = vmatmul.mubr.bf16.gmra.mrb[0].mxu0 %v1823
      %v2220 = vpop.f32.mrb[0].mxu0
      %v2221 = vadd.f32 %v1872, %v2220
      %v2222 = vpop.f32.mrb[0].mxu0
      %v2223 = vpop.f32.mrb[0].mxu0
      %v2224 = vadd.f32 %v1872, %v2223
      %v2225 = vpop.f32.mrb[0].mxu0
      %2226 = vmatprep.mubr.bf16.mxu0 %v1826
      %2227 = vmatmul.mubr.bf16.gmra.mrb[0].mxu0 %v1825
      %v2228 = vpop.f32.mrb[0].mxu0
      %v2229 = vadd.f32 %v1872, %v2228
      %v2230 = vpop.f32.mrb[0].mxu0
      %v2231 = vpop.f32.mrb[0].mxu0
      %v2232 = vadd.f32 %v1872, %v2231
      %v2233 = vpop.f32.mrb[0].mxu0
      %2234 = vmatprep.mubr.bf16.mxu0 %v1828
      %2235 = vmatmul.mubr.bf16.gmra.mrb[0].mxu0 %v1827
      %v2236 = vpop.f32.mrb[0].mxu0
      %v2237 = vadd.f32 %v1872, %v2236
      %v2238 = vpop.f32.mrb[0].mxu0
      %v2239 = vpop.f32.mrb[0].mxu0
      %v2240 = vadd.f32 %v1872, %v2239
      %v2241 = vpop.f32.mrb[0].mxu0
      %2242 = vmatprep.mubr.bf16.mxu0 %v1830
      %2243 = vmatmul.mubr.bf16.gmra.mrb[0].mxu0 %v1829
      %v2244 = vpop.f32.mrb[0].mxu0
      %v2245 = vadd.f32 %v1872, %v2244
      %v2246 = vpop.f32.mrb[0].mxu0
      %v2247 = vpop.f32.mrb[0].mxu0
      %v2248 = vadd.f32 %v1872, %v2247
      %v2249 = vpop.f32.mrb[0].mxu0
      %2250 = vmatprep.mubr.bf16.mxu0 %v1832
      %2251 = vmatmul.mubr.bf16.gmra.mrb[0].mxu0 %v1831
      %v2252 = vpop.f32.mrb[0].mxu0
      %v2253 = vadd.f32 %v1872, %v2252
      %v2254 = vpop.f32.mrb[0].mxu0
      %v2255 = vpop.f32.mrb[0].mxu0
      %v2256 = vadd.f32 %v1872, %v2255
      %v2257 = vpop.f32.mrb[0].mxu0
      %2258 = vmatprep.mubr.bf16.mxu0 %v1834
      %2259 = vmatmul.mubr.bf16.gmra.mrb[0].mxu0 %v1833
      %v2260 = vpop.f32.mrb[0].mxu0
      %v2261 = vadd.f32 %v1872, %v2260
      %v2262 = vpop.f32.mrb[0].mxu0
      %v2263 = vpop.f32.mrb[0].mxu0
      %v2264 = vpop.f32.mrb[0].mxu0
      %2265 = vdwg.mxu0
      %v2266 = vmax.f32 %v2005, 0.0
      %v2267 = vmax.f32 %v2008, 0.0
      %v2268 = vmax.f32 %v2013, 0.0
      %v2269 = vmax.f32 %v2016, 0.0
      %v2270 = vmax.f32 %v2021, 0.0
      %v2271 = vmax.f32 %v2024, 0.0
      %v2272 = vmax.f32 %v2029, 0.0
      %v2273 = vmax.f32 %v2032, 0.0
      %v2274 = vmax.f32 %v2037, 0.0
      %v2275 = vmax.f32 %v2040, 0.0
      %v2276 = vmax.f32 %v2045, 0.0
      %v2277 = vmax.f32 %v2048, 0.0
      %v2278 = vmax.f32 %v2053, 0.0
      %v2279 = vmax.f32 %v2056, 0.0
      %v2280 = vmax.f32 %v2061, 0.0
      %v2281 = vmax.f32 %v2064, 0.0
      %v2282 = vmax.f32 %v2069, 0.0
      %v2283 = vmax.f32 %v2072, 0.0
      %v2284 = vmax.f32 %v2077, 0.0
      %v2285 = vmax.f32 %v2080, 0.0
      %v2286 = vmax.f32 %v2085, 0.0
      %v2287 = vmax.f32 %v2088, 0.0
      %v2288 = vmax.f32 %v2093, 0.0
      %v2289 = vmax.f32 %v2096, 0.0
      %v2290 = vmax.f32 %v2101, 0.0
      %v2291 = vmax.f32 %v2104, 0.0
      %v2292 = vmax.f32 %v2109, 0.0
      %v2293 = vmax.f32 %v2112, 0.0
      %v2294 = vmax.f32 %v2117, 0.0
      %v2295 = vmax.f32 %v2120, 0.0
      %v2296 = vmax.f32 %v2125, 0.0
      %v2297 = vmax.f32 %v2128, 0.0
      %v2298 = vmax.f32 %v2133, 0.0
      %v2299 = vmax.f32 %v2136, 0.0
      %v2300 = vmax.f32 %v2141, 0.0
      %v2301 = vmax.f32 %v2144, 0.0
      %v2302 = vmax.f32 %v2149, 0.0
      %v2303 = vmax.f32 %v2152, 0.0
      %v2304 = vmax.f32 %v2157, 0.0
      %v2305 = vmax.f32 %v2160, 0.0
      %v2306 = vmax.f32 %v2165, 0.0
      %v2307 = vmax.f32 %v2168, 0.0
      %v2308 = vmax.f32 %v2173, 0.0
      %v2309 = vmax.f32 %v2176, 0.0
      %v2310 = vmax.f32 %v2181, 0.0
      %v2311 = vmax.f32 %v2184, 0.0
      %v2312 = vmax.f32 %v2189, 0.0
      %v2313 = vmax.f32 %v2192, 0.0
      %v2314 = vmax.f32 %v2197, 0.0
      %v2315 = vmax.f32 %v2200, 0.0
      %v2316 = vmax.f32 %v2205, 0.0
      %v2317 = vmax.f32 %v2208, 0.0
      %v2318 = vmax.f32 %v2213, 0.0
      %v2319 = vmax.f32 %v2216, 0.0
      %v2320 = vmax.f32 %v2221, 0.0
      %v2321 = vmax.f32 %v2224, 0.0
      %v2322 = vmax.f32 %v2229, 0.0
      %v2323 = vmax.f32 %v2232, 0.0
      %v2324 = vmax.f32 %v2237, 0.0
      %v2325 = vmax.f32 %v2240, 0.0
      %v2326 = vmax.f32 %v2245, 0.0
      %v2327 = vmax.f32 %v2248, 0.0
      %v2328 = vmax.f32 %v2253, 0.0
      %v2329 = vmax.f32 %v2256, 0.0
      %v2330 = vmax.f32 %v2261, 0.0
      %vm2331 = vcmask 64512
      %2332 = vst.msk [vmem:[%s280] sm:$0xff] %vm2331, %v2266
      %2333 = vst.msk [vmem:[%s280 + $0x8] sm:$0xff] %vm2331, %v2267
      %2334 = vst.msk [vmem:[%s280 + $0x10] sm:$0xff] %vm2331, %v2268
      %2335 = vst.msk [vmem:[%s280 + $0x18] sm:$0xff] %vm2331, %v2269
      %2336 = vst.msk [vmem:[%s280 + $0x20] sm:$0xff] %vm2331, %v2270
      %2337 = vst.msk [vmem:[%s280 + $0x28] sm:$0xff] %vm2331, %v2271
      %2338 = vst.msk [vmem:[%s280 + $0x30] sm:$0xff] %vm2331, %v2272
      %2339 = vst.msk [vmem:[%s280 + $0x38] sm:$0xff] %vm2331, %v2273
      %2340 = vst.msk [vmem:[%s280 + $0x40] sm:$0xff] %vm2331, %v2274
      %2341 = vst.msk [vmem:[%s280 + $0x48] sm:$0xff] %vm2331, %v2275
      %2342 = vst.msk [vmem:[%s280 + $0x50] sm:$0xff] %vm2331, %v2276
      %2343 = vst.msk [vmem:[%s280 + $0x58] sm:$0xff] %vm2331, %v2277
      %2344 = vst.msk [vmem:[%s280 + $0x60] sm:$0xff] %vm2331, %v2278
      %2345 = vst.msk [vmem:[%s280 + $0x68] sm:$0xff] %vm2331, %v2279
      %2346 = vst.msk [vmem:[%s280 + $0x70] sm:$0xff] %vm2331, %v2280
      %2347 = vst.msk [vmem:[%s280 + $0x78] sm:$0xff] %vm2331, %v2281
      %2348 = vst.msk [vmem:[%s280 + $0x80] sm:$0xff] %vm2331, %v2282
      %2349 = vst.msk [vmem:[%s280 + $0x88] sm:$0xff] %vm2331, %v2283
      %2350 = vst.msk [vmem:[%s280 + $0x90] sm:$0xff] %vm2331, %v2284
      %2351 = vst.msk [vmem:[%s280 + $0x98] sm:$0xff] %vm2331, %v2285
      %2352 = vst.msk [vmem:[%s280 + $0xa0] sm:$0xff] %vm2331, %v2286
      %2353 = vst.msk [vmem:[%s280 + $0xa8] sm:$0xff] %vm2331, %v2287
      %2354 = vst.msk [vmem:[%s280 + $0xb0] sm:$0xff] %vm2331, %v2288
      %2355 = vst.msk [vmem:[%s280 + $0xb8] sm:$0xff] %vm2331, %v2289
      %2356 = vst.msk [vmem:[%s280 + $0xc0] sm:$0xff] %vm2331, %v2290
      %2357 = vst.msk [vmem:[%s280 + $0xc8] sm:$0xff] %vm2331, %v2291
      %2358 = vst.msk [vmem:[%s280 + $0xd0] sm:$0xff] %vm2331, %v2292
      %2359 = vst.msk [vmem:[%s280 + $0xd8] sm:$0xff] %vm2331, %v2293
      %2360 = vst.msk [vmem:[%s280 + $0xe0] sm:$0xff] %vm2331, %v2294
      %2361 = vst.msk [vmem:[%s280 + $0xe8] sm:$0xff] %vm2331, %v2295
      %2362 = vst.msk [vmem:[%s280 + $0xf0] sm:$0xff] %vm2331, %v2296
      %2363 = vst.msk [vmem:[%s280 + $0xf8] sm:$0xff] %vm2331, %v2297
      %2364 = vst.msk [vmem:[%s280 + $0x100] sm:$0xff] %vm2331, %v2298
      %2365 = vst.msk [vmem:[%s280 + $0x108] sm:$0xff] %vm2331, %v2299
      %2366 = vst.msk [vmem:[%s280 + $0x110] sm:$0xff] %vm2331, %v2300
      %2367 = vst.msk [vmem:[%s280 + $0x118] sm:$0xff] %vm2331, %v2301
      %2368 = vst.msk [vmem:[%s280 + $0x120] sm:$0xff] %vm2331, %v2302
      %2369 = vst.msk [vmem:[%s280 + $0x128] sm:$0xff] %vm2331, %v2303
      %2370 = vst.msk [vmem:[%s280 + $0x130] sm:$0xff] %vm2331, %v2304
      %2371 = vst.msk [vmem:[%s280 + $0x138] sm:$0xff] %vm2331, %v2305
      %2372 = vst.msk [vmem:[%s280 + $0x140] sm:$0xff] %vm2331, %v2306
      %2373 = vst.msk [vmem:[%s280 + $0x148] sm:$0xff] %vm2331, %v2307
      %2374 = vst.msk [vmem:[%s280 + $0x150] sm:$0xff] %vm2331, %v2308
      %2375 = vst.msk [vmem:[%s280 + $0x158] sm:$0xff] %vm2331, %v2309
      %2376 = vst.msk [vmem:[%s280 + $0x160] sm:$0xff] %vm2331, %v2310
      %2377 = vst.msk [vmem:[%s280 + $0x168] sm:$0xff] %vm2331, %v2311
      %2378 = vst.msk [vmem:[%s280 + $0x170] sm:$0xff] %vm2331, %v2312
      %2379 = vst.msk [vmem:[%s280 + $0x178] sm:$0xff] %vm2331, %v2313
      %2380 = vst.msk [vmem:[%s280 + $0x180] sm:$0xff] %vm2331, %v2314
      %2381 = vst.msk [vmem:[%s280 + $0x188] sm:$0xff] %vm2331, %v2315
      %2382 = vst.msk [vmem:[%s280 + $0x190] sm:$0xff] %vm2331, %v2316
      %2383 = vst.msk [vmem:[%s280 + $0x198] sm:$0xff] %vm2331, %v2317
      %2384 = vst.msk [vmem:[%s280 + $0x1a0] sm:$0xff] %vm2331, %v2318
      %2385 = vst.msk [vmem:[%s280 + $0x1a8] sm:$0xff] %vm2331, %v2319
      %2386 = vst.msk [vmem:[%s280 + $0x1b0] sm:$0xff] %vm2331, %v2320
      %2387 = vst.msk [vmem:[%s280 + $0x1b8] sm:$0xff] %vm2331, %v2321
      %2388 = vst.msk [vmem:[%s280 + $0x1c0] sm:$0xff] %vm2331, %v2322
      %2389 = vst.msk [vmem:[%s280 + $0x1c8] sm:$0xff] %vm2331, %v2323
      %2390 = vst.msk [vmem:[%s280 + $0x1d0] sm:$0xff] %vm2331, %v2324
      %2391 = vst.msk [vmem:[%s280 + $0x1d8] sm:$0xff] %vm2331, %v2325
      %2392 = vst.msk [vmem:[%s280 + $0x1e0] sm:$0xff] %vm2331, %v2326
      %2393 = vst.msk [vmem:[%s280 + $0x1e8] sm:$0xff] %vm2331, %v2327
      %2394 = vst.msk [vmem:[%s280 + $0x1f0] sm:$0xff] %vm2331, %v2328
      %2395 = vst.msk [vmem:[%s280 + $0x1f8] sm:$0xff] %vm2331, %v2329
      %2396 = vst.msk [vmem:[%s280 + $0x200] sm:$0xff] %vm2331, %v2330
      %s2397 = smul.u32 65, %s18
      %p2398 = scmp.lt.s32.totalorder %s2397, 129
      %s2399 = scalar_select %p2398, %s2397, 129
      %s2400 = smul.addr %s2399, 8
      %s2401 = scalar_lea.vmem %s7, %s2400
      // Predicated region
      $region49: #{tpu_custom_call.1} parent=47 // pred_check
        %p2402 = pneg %p188
      $region50: #{tpu_custom_call.1} parent=47 // pred_check_branch
        %2404 = sbr.rel (%p2402) target = $region52
      $region51: #{tpu_custom_call.1} parent=47 // pred_region
        %s2405 = smul.u32 65, %s18
      $region52: #{tpu_custom_call.1} parent=47 // pred_fallthru
        _
    $region48: #{tpu_custom_call.1} parent=5 // pred_fallthru
      _
    %p2406 = scmp.le.s32.totalorder 2, %s13
    // Predicated region
    $region53: #{tpu_custom_call.1} parent=5 // pred_check
      %p2407 = pneg %p2406
    $region54: #{tpu_custom_call.1} parent=5 // pred_check_branch
      %2409 = sbr.rel (%p2407) target = $region56
    $region55: #{tpu_custom_call.1} parent=5 // pred_region
      %s2410 = ssub.s32 %s13, 2
      // Predicated region
      $region57: #{tpu_custom_call.1} parent=55 // pred_check
        %p2411 = pneg %p194
      $region58: #{tpu_custom_call.1} parent=55 // pred_check_branch
        %2413 = sbr.rel (%p2411) target = $region60
      $region59: #{tpu_custom_call.1} parent=55 // pred_region
        %s2414 = smul.u32 65, %s19
        %p2415 = scmp.lt.s32.totalorder %s2414, 129
        %s2416 = scalar_select %p2415, %s2414, 129
        %s2417 = smul.addr %s2416, 8
        %s2418 = scalar_lea.vmem %s7, %s2417
      $region60: #{tpu_custom_call.1} parent=55 // pred_fallthru
        _
    $region56: #{tpu_custom_call.1} parent=5 // pred_fallthru
      _
  $region6: #{tpu_custom_call.1} parent=0 // loop_footer
    %s17 = sadd.s32 1, %s13
  $region7: #{tpu_custom_call.1} parent=0 // loop_footer_branch
    %12 = sbr.rel target = $region3
  $region8: #{tpu_custom_call.1} parent=0 // loop_exit
    _

</llo_original>
